<compile_context>
chip_gen: v7x
topology: tpu7x:2x2x1
jax: 0.10.0
libtpu: 0.0.40
codegen_flags: <defaults>
</compile_context>

<pallas_src>
import math
import functools

import jax
import jax.numpy as jnp
from jax.experimental import pallas as pl
from jax.experimental.pallas import tpu as pltpu

LN_EPS = 1e-5
NEG_INF = -1e9


def _layer_norm(x, gamma, beta):
    mean = jnp.mean(x, axis=-1, keepdims=True)
    var = jnp.mean((x - mean) ** 2, axis=-1, keepdims=True)
    return (x - mean) * jax.lax.rsqrt(var + LN_EPS) * gamma + beta


def _softmax(x):
    m = jnp.max(x, axis=-1, keepdims=True)
    e = jnp.exp(x - m)
    return e * pl.reciprocal(jnp.sum(e, axis=-1, keepdims=True), approx=True)


# ---------------------------------------------------------------------------
# Shared encoder-layer body (post-LN, relu FFN, multi-head attention).
# All matmul operands are bf16; accumulation and elementwise math are f32.
# ---------------------------------------------------------------------------
def _encoder_layer_body(n_head, x_ref, mask_ref,
                        wqkv_ref, bqkv_ref, wo_ref, bo_ref,
                        ln1g_ref, ln1b_ref,
                        w1_ref, b1_ref, w2_ref, b2_ref,
                        ln2g_ref, ln2b_ref):
    Bt, S, H = x_ref.shape
    hd = H // n_head
    scale = 1.0 / math.sqrt(hd)

    # bf16 activations feed the MXU directly (no f32 round trip); f32 only on residual/LN path.
    x_bf = x_ref[...].reshape(Bt * S, H)                       # (Bt*S, H) bf16
    x_f32 = x_bf.astype(jnp.float32)

    # fused QKV projection: one (Bt*S, H) @ (H, 3H) bf16 matmul, f32 accumulation
    qkv = jnp.dot(x_bf, wqkv_ref[...],
                  preferred_element_type=jnp.float32) + bqkv_ref[...]
    qkv = qkv.reshape(Bt, S, 3 * H).astype(jnp.bfloat16)       # (Bt, S, 3H)

    # additive key-padding bias in f32, broadcast over the query axis
    mask = mask_ref[...].astype(jnp.float32)                   # (Bt, S), 1 = keep
    key_bias = ((1.0 - mask) * NEG_INF)[:, None, :]            # (Bt, 1, S)

    # TODO(synk): fold the head loop into a single batched 'bqhd,bkhd->bhqk' einsum once
    #             multi-batch-dim dot_general lowering is confirmed on Mosaic; single-batch-dim
    #             einsums are kept here for lowering safety.
    ctx_heads = []
    for h in range(n_head):                                    # static head loop
        lo = h * hd
        qh = qkv[:, :, lo:lo + hd]                             # (Bt, S, hd) bf16
        kh = qkv[:, :, H + lo:H + lo + hd]
        vh = qkv[:, :, 2 * H + lo:2 * H + lo + hd]
        # contract on the head dim directly (no explicit transpose)
        s = jnp.einsum('bqd,bkd->bqk', qh, kh,
                       preferred_element_type=jnp.float32) * scale + key_bias
        p = _softmax(s).astype(jnp.bfloat16)                   # softmax in f32
        ctx = jnp.einsum('bqk,bkd->bqd', p, vh,
                         preferred_element_type=jnp.float32)   # (Bt, S, hd) f32
        ctx_heads.append(ctx.astype(jnp.bfloat16))

    # one lane-dense (Bt*S, H) bf16 buffer, then a SINGLE K=H output projection:
    # fills the MXU depth (vs n_head K=hd matmuls) and drops the long-lived f32 accumulator.
    ctx_all = jnp.concatenate(ctx_heads, axis=-1).reshape(Bt * S, H)
    attn = jnp.dot(ctx_all, wo_ref[...],
                   preferred_element_type=jnp.float32) + bo_ref[...]

    # attention / residual dropout are identity in eval mode
    h1 = _layer_norm(x_f32 + attn, ln1g_ref[...], ln1b_ref[...])   # (Bt*S, H) f32

    ff = jnp.dot(h1.astype(jnp.bfloat16), w1_ref[...],
                 preferred_element_type=jnp.float32) + b1_ref[...]
    ff = jnp.maximum(ff, 0.0)                                  # activation='relu'
    ff = jnp.dot(ff.astype(jnp.bfloat16), w2_ref[...],
                 preferred_element_type=jnp.float32) + b2_ref[...]
    h2 = _layer_norm(h1 + ff, ln2g_ref[...], ln2b_ref[...])    # (Bt*S, H) f32
    return h2


def encoder_layer_kernel(n_head, x_ref, mask_ref, *refs):
    (wqkv_ref, bqkv_ref, wo_ref, bo_ref, ln1g_ref, ln1b_ref,
     w1_ref, b1_ref, w2_ref, b2_ref, ln2g_ref, ln2b_ref, out_ref) = refs
    Bt, S, H = x_ref.shape
    h2 = _encoder_layer_body(n_head, x_ref, mask_ref,
                             wqkv_ref, bqkv_ref, wo_ref, bo_ref,
                             ln1g_ref, ln1b_ref,
                             w1_ref, b1_ref, w2_ref, b2_ref,
                             ln2g_ref, ln2b_ref)
    # emit inter-layer activations in bf16 (halves HBM traffic between layers)
    out_ref[...] = h2.reshape(Bt, S, H).astype(out_ref.dtype)


def encoder_layer_classifier_kernel(n_head, num_labels, x_ref, mask_ref, *refs):
    (wqkv_ref, bqkv_ref, wo_ref, bo_ref, ln1g_ref, ln1b_ref,
     w1_ref, b1_ref, w2_ref, b2_ref, ln2g_ref, ln2b_ref,
     wc_ref, bc_ref, logits_ref, pred_ref) = refs
    Bt, S, H = x_ref.shape
    Lp = wc_ref.shape[1]                                       # lane-dense padded label dim
    h2 = _encoder_layer_body(n_head, x_ref, mask_ref,
                             wqkv_ref, bqkv_ref, wo_ref, bo_ref,
                             ln1g_ref, ln1b_ref,
                             w1_ref, b1_ref, w2_ref, b2_ref,
                             ln2g_ref, ln2b_ref)

    logits = jnp.dot(h2.astype(jnp.bfloat16), wc_ref[...],
                     preferred_element_type=jnp.float32) + bc_ref[...]   # (Bt*S, Lp) f32
    logits3 = logits.reshape(Bt, S, Lp)
    logits_ref[...] = logits3.astype(logits_ref.dtype)         # bf16 HBM write

    # first-index argmax over the real label axis (padded lanes masked out), computed from f32
    col = jax.lax.broadcasted_iota(jnp.int32, logits3.shape, 2)
    masked = jnp.where(col < num_labels, logits3, -jnp.inf)
    m = jnp.max(masked, axis=-1, keepdims=True)
    cand = jnp.where(masked == m, col, Lp)
    pred_ref[...] = jnp.min(cand, axis=-1).astype(jnp.int32)   # (Bt, S)


# ---------------------------------------------------------------------------
# pallas_call wrappers
# ---------------------------------------------------------------------------
@functools.lru_cache(maxsize=1)
def _vmem_limit_bytes():
    # ~85% of physical VMEM (≈109 MiB on v5e/v6e's 128 MiB, ≈54 MiB on v7x's 64 MiB),
    # leaving headroom for double-buffered activation blocks.
    try:
        cap = pltpu.get_tpu_info().vmem_capacity_bytes
    except Exception:
        cap = 64 << 20          # conservative fallback (fits every generation)
    return int(cap * 0.85)


def _compiler_params():
    return pltpu.CompilerParams(dimension_semantics=("parallel",),
                                vmem_limit_bytes=_vmem_limit_bytes())


def _rep_spec(shape):
    # replicated weight block: constant index_map -> single-buffer it (halves weight VMEM)
    n = len(shape)
    return pl.BlockSpec(shape, lambda b, _n=n: (0,) * _n,
                        pipeline_mode=pl.Buffered(1))


def _layer_specs(Bt, S, H, F):
    return [
        pl.BlockSpec((Bt, S, H), lambda b: (b, 0, 0)),        # x
        pl.BlockSpec((Bt, S), lambda b: (b, 0)),              # key-padding mask
        _rep_spec((H, 3 * H)), _rep_spec((1, 3 * H)),         # wqkv, bqkv
        _rep_spec((H, H)), _rep_spec((1, H)),                 # wo, bo
        _rep_spec((1, H)), _rep_spec((1, H)),                 # ln1 gamma, beta
        _rep_spec((H, F)), _rep_spec((1, F)),                 # ffn w1, b1
        _rep_spec((F, H)), _rep_spec((1, H)),                 # ffn w2, b2
        _rep_spec((1, H)), _rep_spec((1, H)),                 # ln2 gamma, beta
    ]


def _layer_args(x, mask, p):
    return (x, mask,
            p['wqkv'], p['bqkv'], p['wo'], p['bo'], p['ln1g'], p['ln1b'],
            p['w1'], p['b1'], p['w2'], p['b2'], p['ln2g'], p['ln2b'])


def run_encoder_layer(x, mask, p, n_head, Bt):
    B, S, H = x.shape
    F = p['w1'].shape[1]
    return pl.pallas_call(
        functools.partial(encoder_layer_kernel, n_head),
        out_shape=jax.ShapeDtypeStruct((B, S, H), jnp.bfloat16),
        grid=(B // Bt,),
        in_specs=_layer_specs(Bt, S, H, F),
        out_specs=pl.BlockSpec((Bt, S, H), lambda b: (b, 0, 0)),
        compiler_params=_compiler_params(),
    )(*_layer_args(x, mask, p))


def run_encoder_layer_with_classifier(x, mask, p, wc_pad, bc_pad, n_head, num_labels, Bt):
    B, S, H = x.shape
    F = p['w1'].shape[1]
    Lp = wc_pad.shape[1]
    in_specs = _layer_specs(Bt, S, H, F) + [_rep_spec((H, Lp)), _rep_spec((1, Lp))]
    logits, pred = pl.pallas_call(
        functools.partial(encoder_layer_classifier_kernel, n_head, num_labels),
        out_shape=(jax.ShapeDtypeStruct((B, S, Lp), jnp.bfloat16),
                   jax.ShapeDtypeStruct((B, S), jnp.int32)),
        grid=(B // Bt,),
        in_specs=in_specs,
        out_specs=(pl.BlockSpec((Bt, S, Lp), lambda b: (b, 0, 0)),
                   pl.BlockSpec((Bt, S), lambda b: (b, 0))),
        compiler_params=_compiler_params(),
    )(*_layer_args(x, mask, p), wc_pad, bc_pad)
    return logits, pred


def _pick_bt(B, S, target_rows=512):
    # feed the 256-wide v6e/v7x MXUs: aim for ~512 tokens (Bt*S) per grid step
    return max(1, min(B, target_rows // max(S, 1)))


def _pad_batch(x, b_pad):
    b = x.shape[0]
    if b_pad == b:
        return x
    return jnp.pad(x, [(0, b_pad - b)] + [(0, 0)] * (x.ndim - 1))


# ---------------------------------------------------------------------------
# Full forward (labels=None branch -> returns (pred, logits) like the module)
# ---------------------------------------------------------------------------
def srl_forward(params, input_ids, features, attention_mask, n_head, num_labels):
    # sentence_encoder glue: embedding lookup + linear projection of extra features
    emb = params['embedding'][input_ids]                       # (B, S, H)
    enc = emb + jnp.dot(features[0], params['w_feat'])         # (B, S, H)

    # TODO(synk): bert_mask_wrapper is not defined in the snippet; the 0/1 attention_mask
    # (1 = keep, 0 = pad) is used directly as the key-padding mask here.
    mask = attention_mask.astype(jnp.float32)                  # (B, S)

    B, S, _ = enc.shape
    Bt = _pick_bt(B, S)
    b_pad = -(-B // Bt) * Bt                                   # pad batch so Bt | B (no Bt=1 fallback)

    x = _pad_batch(enc.astype(jnp.bfloat16), b_pad)
    mask_p = _pad_batch(mask, b_pad)

    for lp in params['layers'][:-1]:
        x = run_encoder_layer(x, mask_p, lp, n_head, Bt)

    # last layer fused with the classifier (+argmax): saves one launch and one
    # full activation HBM round trip.  self.dropout is identity in eval mode.
    logits_pad, pred = run_encoder_layer_with_classifier(
        x, mask_p, params['layers'][-1], params['wc_pad'], params['bc_pad'],
        n_head, num_labels, Bt)
    # logits stay bf16 (halves the padded (B,S,Lp) HBM write); cheap slice removes lane/batch padding
    logits = logits_pad[:B, :, :num_labels]
    pred = pred[:B]
    return pred, logits


# ---------------------------------------------------------------------------
# Deterministic parameter construction (matmul weights in bf16, everything else f32)
# ---------------------------------------------------------------------------
def init_params(key, vocab, feat_dim, hidden, dff, num_labels, num_layers):
    def nrm(k, shape, scale=0.02, dtype=jnp.float32):
        return (scale * jax.random.normal(k, shape)).astype(dtype)

    lpad = ((num_labels + 127) // 128) * 128                   # lane-dense classifier width
    keys = iter(jax.random.split(key, 4 + num_layers * 6))

    wc = nrm(next(keys), (hidden, num_labels))
    params = {
        'embedding': nrm(next(keys), (vocab, hidden)),
        'w_feat': nrm(next(keys), (feat_dim, hidden)),
        'wc_pad': jnp.zeros((hidden, lpad), jnp.bfloat16)
                    .at[:, :num_labels].set(wc.astype(jnp.bfloat16)),
        'bc_pad': jnp.zeros((1, lpad), jnp.float32),
        'layers': [],
    }
    for _ in range(num_layers):
        wq = nrm(next(keys), (hidden, hidden))
        wk = nrm(next(keys), (hidden, hidden))
        wv = nrm(next(keys), (hidden, hidden))
        lp = {
            'wqkv': jnp.concatenate([wq, wk, wv], axis=1).astype(jnp.bfloat16),
            'bqkv': jnp.zeros((1, 3 * hidden), jnp.float32),
            'wo': nrm(next(keys), (hidden, hidden), dtype=jnp.bfloat16),
            'bo': jnp.zeros((1, hidden), jnp.float32),
            'ln1g': jnp.ones((1, hidden), jnp.float32),
            'ln1b': jnp.zeros((1, hidden), jnp.float32),
            'w1': nrm(next(keys), (hidden, dff), dtype=jnp.bfloat16),
            'b1': jnp.zeros((1, dff), jnp.float32),
            'w2': nrm(next(keys), (dff, hidden), dtype=jnp.bfloat16),
            'b2': jnp.zeros((1, hidden), jnp.float32),
            'ln2g': jnp.ones((1, hidden), jnp.float32),
            'ln2b': jnp.zeros((1, hidden), jnp.float32),
        }
        params['layers'].append(lp)
    return params


if __name__ == "__main__":
    B, S, H = 2, 8, 32
    N_HEAD, DFF, NUM_LABELS = 4, 64, 5
    VOCAB, FEAT_DIM, NUM_LAYERS = 50, 6, 2

    key = jax.random.PRNGKey(0)
    kp, kid, kfeat = jax.random.split(key, 3)

    params = init_params(kp, VOCAB, FEAT_DIM, H, DFF, NUM_LABELS, NUM_LAYERS)

    input_ids = jax.random.randint(kid, (B, S), 0, VOCAB, dtype=jnp.int32)
    features = (jax.random.normal(kfeat, (B, S, FEAT_DIM), dtype=jnp.float32),)
    attention_mask = jnp.ones((B, S), jnp.int32).at[:, -2:].set(0)  # last 2 tokens padded

    pred, logits = srl_forward(params, input_ids, features, attention_mask, N_HEAD, NUM_LABELS)
    jax.block_until_ready((pred, logits))

    assert pred.shape == (B, S) and pred.dtype == jnp.int32
    assert logits.shape == (B, S, NUM_LABELS)
    print("KERNEL_OK")
</pallas_src>

<mosaic_0001>
module attributes {stable_mosaic.version = 11 : i64} {
  func.func @encoder_layer_kernel(%arg0: i32, %arg1: memref<2x8x32xbf16, #tpu.memory_space<vmem>>, %arg2: memref<2x8xf32, #tpu.memory_space<vmem>>, %arg3: memref<32x96xbf16, #tpu.memory_space<vmem>>, %arg4: memref<1x96xf32, #tpu.memory_space<vmem>>, %arg5: memref<32x32xbf16, #tpu.memory_space<vmem>>, %arg6: memref<1x32xf32, #tpu.memory_space<vmem>>, %arg7: memref<1x32xf32, #tpu.memory_space<vmem>>, %arg8: memref<1x32xf32, #tpu.memory_space<vmem>>, %arg9: memref<32x64xbf16, #tpu.memory_space<vmem>>, %arg10: memref<1x64xf32, #tpu.memory_space<vmem>>, %arg11: memref<64x32xbf16, #tpu.memory_space<vmem>>, %arg12: memref<1x32xf32, #tpu.memory_space<vmem>>, %arg13: memref<1x32xf32, #tpu.memory_space<vmem>>, %arg14: memref<1x32xf32, #tpu.memory_space<vmem>>, %arg15: memref<2x8x32xbf16, #tpu.memory_space<vmem>>) attributes {dimension_semantics = [#tpu.dimension_semantics<parallel>], iteration_bounds = array<i64: 1>, scalar_prefetch = 0 : i64, scratch_operands = 0 : i64, tpu.core_type = #tpu.core_type<tc>, window_params = [{transform_indices = @transform_0, window_bounds = array<i64: 2, 8, 32>}, {transform_indices = @transform_1, window_bounds = array<i64: 2, 8>}, {pipeline_mode = #tpu.pipeline_mode<synchronous>, transform_indices = @transform_2, window_bounds = array<i64: 32, 96>}, {pipeline_mode = #tpu.pipeline_mode<synchronous>, transform_indices = @transform_3, window_bounds = array<i64: 1, 96>}, {pipeline_mode = #tpu.pipeline_mode<synchronous>, transform_indices = @transform_4, window_bounds = array<i64: 32, 32>}, {pipeline_mode = #tpu.pipeline_mode<synchronous>, transform_indices = @transform_5, window_bounds = array<i64: 1, 32>}, {pipeline_mode = #tpu.pipeline_mode<synchronous>, transform_indices = @transform_6, window_bounds = array<i64: 1, 32>}, {pipeline_mode = #tpu.pipeline_mode<synchronous>, transform_indices = @transform_7, window_bounds = array<i64: 1, 32>}, {pipeline_mode = #tpu.pipeline_mode<synchronous>, transform_indices = @transform_8, window_bounds = array<i64: 32, 64>}, {pipeline_mode = #tpu.pipeline_mode<synchronous>, transform_indices = @transform_9, window_bounds = array<i64: 1, 64>}, {pipeline_mode = #tpu.pipeline_mode<synchronous>, transform_indices = @transform_10, window_bounds = array<i64: 64, 32>}, {pipeline_mode = #tpu.pipeline_mode<synchronous>, transform_indices = @transform_11, window_bounds = array<i64: 1, 32>}, {pipeline_mode = #tpu.pipeline_mode<synchronous>, transform_indices = @transform_12, window_bounds = array<i64: 1, 32>}, {pipeline_mode = #tpu.pipeline_mode<synchronous>, transform_indices = @transform_13, window_bounds = array<i64: 1, 32>}, {transform_indices = @transform_14, window_bounds = array<i64: 2, 8, 32>}]} {
    %c0 = arith.constant 0 : index
    %c0_0 = arith.constant 0 : index
    %c0_1 = arith.constant 0 : index
    %0 = vector.load %arg1[%c0, %c0_0, %c0_1] : memref<2x8x32xbf16, #tpu.memory_space<vmem>>, vector<2x8x32xbf16>
    %1 = vector.shape_cast %0 : vector<2x8x32xbf16> to vector<16x32xbf16>
    %2 = arith.extf %1 : vector<16x32xbf16> to vector<16x32xf32>
    %c0_2 = arith.constant 0 : index
    %c0_3 = arith.constant 0 : index
    %3 = vector.load %arg3[%c0_2, %c0_3] : memref<32x96xbf16, #tpu.memory_space<vmem>>, vector<32x96xbf16>
    %cst = arith.constant dense<0.000000e+00> : vector<16x96xf32>
    %4 = tpu.matmul %1, %3, %cst {dimension_numbers = #tpu.dot_dimension_numbers<[1], [0], [0], [1], [0, 0, 1, 1], [], []>} : vector<16x32xbf16>, vector<32x96xbf16>, vector<16x96xf32> -> vector<16x96xf32>
    %c0_4 = arith.constant 0 : index
    %c0_5 = arith.constant 0 : index
    %5 = vector.load %arg4[%c0_4, %c0_5] : memref<1x96xf32, #tpu.memory_space<vmem>>, vector<1x96xf32>
    %6 = vector.broadcast %5 : vector<1x96xf32> to vector<16x96xf32>
    %7 = arith.addf %4, %6 : vector<16x96xf32>
    %8 = vector.shape_cast %7 : vector<16x96xf32> to vector<2x8x96xf32>
    %9 = arith.truncf %8 : vector<2x8x96xf32> to vector<2x8x96xbf16>
    %c0_6 = arith.constant 0 : index
    %c0_7 = arith.constant 0 : index
    %10 = vector.load %arg2[%c0_6, %c0_7] : memref<2x8xf32, #tpu.memory_space<vmem>>, vector<2x8xf32>
    %cst_8 = arith.constant 1.000000e+00 : f32
    %11 = vector.broadcast %cst_8 : f32 to vector<2x8xf32>
    %12 = arith.subf %11, %10 : vector<2x8xf32>
    %cst_9 = arith.constant -1.000000e+09 : f32
    %13 = vector.broadcast %cst_9 : f32 to vector<2x8xf32>
    %14 = arith.mulf %12, %13 : vector<2x8xf32>
    %15 = vector.shape_cast %14 : vector<2x8xf32> to vector<2x1x8xf32>
    %16 = vector.extract_strided_slice %9 {offsets = [0, 0, 0], sizes = [2, 8, 8], strides = [1, 1, 1]} : vector<2x8x96xbf16> to vector<2x8x8xbf16>
    %17 = vector.extract_strided_slice %9 {offsets = [0, 0, 32], sizes = [2, 8, 8], strides = [1, 1, 1]} : vector<2x8x96xbf16> to vector<2x8x8xbf16>
    %18 = vector.extract_strided_slice %9 {offsets = [0, 0, 64], sizes = [2, 8, 8], strides = [1, 1, 1]} : vector<2x8x96xbf16> to vector<2x8x8xbf16>
    "tpu.trace_start"() <{level = 10 : i32, message = "bqd,bkd->bqk"}> : () -> ()
    %cst_10 = arith.constant dense<0.000000e+00> : vector<2x8x8xf32>
    %19 = tpu.matmul %16, %17, %cst_10 {dimension_numbers = #tpu.dot_dimension_numbers<[2], [2], [1], [1], [0, 0, 0, 1, 1, 1], [0], [0]>} : vector<2x8x8xbf16>, vector<2x8x8xbf16>, vector<2x8x8xf32> -> vector<2x8x8xf32>
    "tpu.trace_stop"() : () -> ()
    %cst_11 = arith.constant 0.353553385 : f32
    %20 = vector.broadcast %cst_11 : f32 to vector<2x8x8xf32>
    %21 = arith.mulf %19, %20 : vector<2x8x8xf32>
    %22 = vector.broadcast %15 : vector<2x1x8xf32> to vector<2x8x8xf32>
    %23 = arith.addf %21, %22 : vector<2x8x8xf32>
    %cst_12 = arith.constant dense<0xFF800000> : vector<2x8xf32>
    %24 = vector.multi_reduction <maximumf>, %23, %cst_12 [2] : vector<2x8x8xf32> to vector<2x8xf32>
    %25 = vector.shape_cast %24 : vector<2x8xf32> to vector<2x8x1xf32>
    %26 = vector.broadcast %25 : vector<2x8x1xf32> to vector<2x8x8xf32>
    %27 = arith.subf %23, %26 : vector<2x8x8xf32>
    %28 = math.exp %27 : vector<2x8x8xf32>
    %cst_13 = arith.constant dense<0.000000e+00> : vector<2x8xf32>
    %29 = vector.multi_reduction <add>, %28, %cst_13 [2] : vector<2x8x8xf32> to vector<2x8xf32>
    %30 = vector.shape_cast %29 : vector<2x8xf32> to vector<2x8x1xf32>
    %31 = tpu.reciprocal %30 {approx = true} : vector<2x8x1xf32> -> vector<2x8x1xf32>
    %32 = vector.broadcast %31 : vector<2x8x1xf32> to vector<2x8x8xf32>
    %33 = arith.mulf %28, %32 : vector<2x8x8xf32>
    %34 = arith.truncf %33 : vector<2x8x8xf32> to vector<2x8x8xbf16>
    "tpu.trace_start"() <{level = 10 : i32, message = "bqk,bkd->bqd"}> : () -> ()
    %cst_14 = arith.constant dense<0.000000e+00> : vector<2x8x8xf32>
    %35 = tpu.matmul %34, %18, %cst_14 {dimension_numbers = #tpu.dot_dimension_numbers<[2], [1], [1], [2], [0, 0, 0, 1, 1, 2], [0], [0]>} : vector<2x8x8xbf16>, vector<2x8x8xbf16>, vector<2x8x8xf32> -> vector<2x8x8xf32>
    "tpu.trace_stop"() : () -> ()
    %36 = arith.truncf %35 : vector<2x8x8xf32> to vector<2x8x8xbf16>
    %37 = vector.extract_strided_slice %9 {offsets = [0, 0, 8], sizes = [2, 8, 8], strides = [1, 1, 1]} : vector<2x8x96xbf16> to vector<2x8x8xbf16>
    %38 = vector.extract_strided_slice %9 {offsets = [0, 0, 40], sizes = [2, 8, 8], strides = [1, 1, 1]} : vector<2x8x96xbf16> to vector<2x8x8xbf16>
    %39 = vector.extract_strided_slice %9 {offsets = [0, 0, 72], sizes = [2, 8, 8], strides = [1, 1, 1]} : vector<2x8x96xbf16> to vector<2x8x8xbf16>
    "tpu.trace_start"() <{level = 10 : i32, message = "bqd,bkd->bqk"}> : () -> ()
    %cst_15 = arith.constant dense<0.000000e+00> : vector<2x8x8xf32>
    %40 = tpu.matmul %37, %38, %cst_15 {dimension_numbers = #tpu.dot_dimension_numbers<[2], [2], [1], [1], [0, 0, 0, 1, 1, 1], [0], [0]>} : vector<2x8x8xbf16>, vector<2x8x8xbf16>, vector<2x8x8xf32> -> vector<2x8x8xf32>
    "tpu.trace_stop"() : () -> ()
    %cst_16 = arith.constant 0.353553385 : f32
    %41 = vector.broadcast %cst_16 : f32 to vector<2x8x8xf32>
    %42 = arith.mulf %40, %41 : vector<2x8x8xf32>
    %43 = vector.broadcast %15 : vector<2x1x8xf32> to vector<2x8x8xf32>
    %44 = arith.addf %42, %43 : vector<2x8x8xf32>
    %cst_17 = arith.constant dense<0xFF800000> : vector<2x8xf32>
    %45 = vector.multi_reduction <maximumf>, %44, %cst_17 [2] : vector<2x8x8xf32> to vector<2x8xf32>
    %46 = vector.shape_cast %45 : vector<2x8xf32> to vector<2x8x1xf32>
    %47 = vector.broadcast %46 : vector<2x8x1xf32> to vector<2x8x8xf32>
    %48 = arith.subf %44, %47 : vector<2x8x8xf32>
    %49 = math.exp %48 : vector<2x8x8xf32>
    %cst_18 = arith.constant dense<0.000000e+00> : vector<2x8xf32>
    %50 = vector.multi_reduction <add>, %49, %cst_18 [2] : vector<2x8x8xf32> to vector<2x8xf32>
    %51 = vector.shape_cast %50 : vector<2x8xf32> to vector<2x8x1xf32>
    %52 = tpu.reciprocal %51 {approx = true} : vector<2x8x1xf32> -> vector<2x8x1xf32>
    %53 = vector.broadcast %52 : vector<2x8x1xf32> to vector<2x8x8xf32>
    %54 = arith.mulf %49, %53 : vector<2x8x8xf32>
    %55 = arith.truncf %54 : vector<2x8x8xf32> to vector<2x8x8xbf16>
    "tpu.trace_start"() <{level = 10 : i32, message = "bqk,bkd->bqd"}> : () -> ()
    %cst_19 = arith.constant dense<0.000000e+00> : vector<2x8x8xf32>
    %56 = tpu.matmul %55, %39, %cst_19 {dimension_numbers = #tpu.dot_dimension_numbers<[2], [1], [1], [2], [0, 0, 0, 1, 1, 2], [0], [0]>} : vector<2x8x8xbf16>, vector<2x8x8xbf16>, vector<2x8x8xf32> -> vector<2x8x8xf32>
    "tpu.trace_stop"() : () -> ()
    %57 = arith.truncf %56 : vector<2x8x8xf32> to vector<2x8x8xbf16>
    %58 = vector.extract_strided_slice %9 {offsets = [0, 0, 16], sizes = [2, 8, 8], strides = [1, 1, 1]} : vector<2x8x96xbf16> to vector<2x8x8xbf16>
    %59 = vector.extract_strided_slice %9 {offsets = [0, 0, 48], sizes = [2, 8, 8], strides = [1, 1, 1]} : vector<2x8x96xbf16> to vector<2x8x8xbf16>
    %60 = vector.extract_strided_slice %9 {offsets = [0, 0, 80], sizes = [2, 8, 8], strides = [1, 1, 1]} : vector<2x8x96xbf16> to vector<2x8x8xbf16>
    "tpu.trace_start"() <{level = 10 : i32, message = "bqd,bkd->bqk"}> : () -> ()
    %cst_20 = arith.constant dense<0.000000e+00> : vector<2x8x8xf32>
    %61 = tpu.matmul %58, %59, %cst_20 {dimension_numbers = #tpu.dot_dimension_numbers<[2], [2], [1], [1], [0, 0, 0, 1, 1, 1], [0], [0]>} : vector<2x8x8xbf16>, vector<2x8x8xbf16>, vector<2x8x8xf32> -> vector<2x8x8xf32>
    "tpu.trace_stop"() : () -> ()
    %cst_21 = arith.constant 0.353553385 : f32
    %62 = vector.broadcast %cst_21 : f32 to vector<2x8x8xf32>
    %63 = arith.mulf %61, %62 : vector<2x8x8xf32>
    %64 = vector.broadcast %15 : vector<2x1x8xf32> to vector<2x8x8xf32>
    %65 = arith.addf %63, %64 : vector<2x8x8xf32>
    %cst_22 = arith.constant dense<0xFF800000> : vector<2x8xf32>
    %66 = vector.multi_reduction <maximumf>, %65, %cst_22 [2] : vector<2x8x8xf32> to vector<2x8xf32>
    %67 = vector.shape_cast %66 : vector<2x8xf32> to vector<2x8x1xf32>
    %68 = vector.broadcast %67 : vector<2x8x1xf32> to vector<2x8x8xf32>
    %69 = arith.subf %65, %68 : vector<2x8x8xf32>
    %70 = math.exp %69 : vector<2x8x8xf32>
    %cst_23 = arith.constant dense<0.000000e+00> : vector<2x8xf32>
    %71 = vector.multi_reduction <add>, %70, %cst_23 [2] : vector<2x8x8xf32> to vector<2x8xf32>
    %72 = vector.shape_cast %71 : vector<2x8xf32> to vector<2x8x1xf32>
    %73 = tpu.reciprocal %72 {approx = true} : vector<2x8x1xf32> -> vector<2x8x1xf32>
    %74 = vector.broadcast %73 : vector<2x8x1xf32> to vector<2x8x8xf32>
    %75 = arith.mulf %70, %74 : vector<2x8x8xf32>
    %76 = arith.truncf %75 : vector<2x8x8xf32> to vector<2x8x8xbf16>
    "tpu.trace_start"() <{level = 10 : i32, message = "bqk,bkd->bqd"}> : () -> ()
    %cst_24 = arith.constant dense<0.000000e+00> : vector<2x8x8xf32>
    %77 = tpu.matmul %76, %60, %cst_24 {dimension_numbers = #tpu.dot_dimension_numbers<[2], [1], [1], [2], [0, 0, 0, 1, 1, 2], [0], [0]>} : vector<2x8x8xbf16>, vector<2x8x8xbf16>, vector<2x8x8xf32> -> vector<2x8x8xf32>
    "tpu.trace_stop"() : () -> ()
    %78 = arith.truncf %77 : vector<2x8x8xf32> to vector<2x8x8xbf16>
    %79 = vector.extract_strided_slice %9 {offsets = [0, 0, 24], sizes = [2, 8, 8], strides = [1, 1, 1]} : vector<2x8x96xbf16> to vector<2x8x8xbf16>
    %80 = vector.extract_strided_slice %9 {offsets = [0, 0, 56], sizes = [2, 8, 8], strides = [1, 1, 1]} : vector<2x8x96xbf16> to vector<2x8x8xbf16>
    %81 = vector.extract_strided_slice %9 {offsets = [0, 0, 88], sizes = [2, 8, 8], strides = [1, 1, 1]} : vector<2x8x96xbf16> to vector<2x8x8xbf16>
    "tpu.trace_start"() <{level = 10 : i32, message = "bqd,bkd->bqk"}> : () -> ()
    %cst_25 = arith.constant dense<0.000000e+00> : vector<2x8x8xf32>
    %82 = tpu.matmul %79, %80, %cst_25 {dimension_numbers = #tpu.dot_dimension_numbers<[2], [2], [1], [1], [0, 0, 0, 1, 1, 1], [0], [0]>} : vector<2x8x8xbf16>, vector<2x8x8xbf16>, vector<2x8x8xf32> -> vector<2x8x8xf32>
    "tpu.trace_stop"() : () -> ()
    %cst_26 = arith.constant 0.353553385 : f32
    %83 = vector.broadcast %cst_26 : f32 to vector<2x8x8xf32>
    %84 = arith.mulf %82, %83 : vector<2x8x8xf32>
    %85 = vector.broadcast %15 : vector<2x1x8xf32> to vector<2x8x8xf32>
    %86 = arith.addf %84, %85 : vector<2x8x8xf32>
    %cst_27 = arith.constant dense<0xFF800000> : vector<2x8xf32>
    %87 = vector.multi_reduction <maximumf>, %86, %cst_27 [2] : vector<2x8x8xf32> to vector<2x8xf32>
    %88 = vector.shape_cast %87 : vector<2x8xf32> to vector<2x8x1xf32>
    %89 = vector.broadcast %88 : vector<2x8x1xf32> to vector<2x8x8xf32>
    %90 = arith.subf %86, %89 : vector<2x8x8xf32>
    %91 = math.exp %90 : vector<2x8x8xf32>
    %cst_28 = arith.constant dense<0.000000e+00> : vector<2x8xf32>
    %92 = vector.multi_reduction <add>, %91, %cst_28 [2] : vector<2x8x8xf32> to vector<2x8xf32>
    %93 = vector.shape_cast %92 : vector<2x8xf32> to vector<2x8x1xf32>
    %94 = tpu.reciprocal %93 {approx = true} : vector<2x8x1xf32> -> vector<2x8x1xf32>
    %95 = vector.broadcast %94 : vector<2x8x1xf32> to vector<2x8x8xf32>
    %96 = arith.mulf %91, %95 : vector<2x8x8xf32>
    %97 = arith.truncf %96 : vector<2x8x8xf32> to vector<2x8x8xbf16>
    "tpu.trace_start"() <{level = 10 : i32, message = "bqk,bkd->bqd"}> : () -> ()
    %cst_29 = arith.constant dense<0.000000e+00> : vector<2x8x8xf32>
    %98 = tpu.matmul %97, %81, %cst_29 {dimension_numbers = #tpu.dot_dimension_numbers<[2], [1], [1], [2], [0, 0, 0, 1, 1, 2], [0], [0]>} : vector<2x8x8xbf16>, vector<2x8x8xbf16>, vector<2x8x8xf32> -> vector<2x8x8xf32>
    "tpu.trace_stop"() : () -> ()
    %99 = arith.truncf %98 : vector<2x8x8xf32> to vector<2x8x8xbf16>
    %100 = tpu.concatenate %36, %57, %78, %99 in 2 : vector<2x8x8xbf16>, vector<2x8x8xbf16>, vector<2x8x8xbf16>, vector<2x8x8xbf16> -> vector<2x8x32xbf16>
    %101 = vector.shape_cast %100 : vector<2x8x32xbf16> to vector<16x32xbf16>
    %c0_30 = arith.constant 0 : index
    %c0_31 = arith.constant 0 : index
    %102 = vector.load %arg5[%c0_30, %c0_31] : memref<32x32xbf16, #tpu.memory_space<vmem>>, vector<32x32xbf16>
    %cst_32 = arith.constant dense<0.000000e+00> : vector<16x32xf32>
    %103 = tpu.matmul %101, %102, %cst_32 {dimension_numbers = #tpu.dot_dimension_numbers<[1], [0], [0], [1], [0, 0, 1, 1], [], []>} : vector<16x32xbf16>, vector<32x32xbf16>, vector<16x32xf32> -> vector<16x32xf32>
    %c0_33 = arith.constant 0 : index
    %c0_34 = arith.constant 0 : index
    %104 = vector.load %arg6[%c0_33, %c0_34] : memref<1x32xf32, #tpu.memory_space<vmem>>, vector<1x32xf32>
    %105 = vector.broadcast %104 : vector<1x32xf32> to vector<16x32xf32>
    %106 = arith.addf %103, %105 : vector<16x32xf32>
    %107 = arith.addf %2, %106 : vector<16x32xf32>
    %c0_35 = arith.constant 0 : index
    %c0_36 = arith.constant 0 : index
    %108 = vector.load %arg7[%c0_35, %c0_36] : memref<1x32xf32, #tpu.memory_space<vmem>>, vector<1x32xf32>
    %c0_37 = arith.constant 0 : index
    %c0_38 = arith.constant 0 : index
    %109 = vector.load %arg8[%c0_37, %c0_38] : memref<1x32xf32, #tpu.memory_space<vmem>>, vector<1x32xf32>
    %cst_39 = arith.constant dense<0.000000e+00> : vector<16xf32>
    %110 = vector.multi_reduction <add>, %107, %cst_39 [1] : vector<16x32xf32> to vector<16xf32>
    %111 = vector.shape_cast %110 : vector<16xf32> to vector<16x1xf32>
    %cst_40 = arith.constant 3.200000e+01 : f32
    %112 = vector.broadcast %cst_40 : f32 to vector<16x1xf32>
    %113 = arith.divf %111, %112 : vector<16x1xf32>
    %114 = vector.broadcast %113 : vector<16x1xf32> to vector<16x32xf32>
    %115 = arith.subf %107, %114 : vector<16x32xf32>
    %116 = arith.mulf %115, %115 : vector<16x32xf32>
    %cst_41 = arith.constant dense<0.000000e+00> : vector<16xf32>
    %117 = vector.multi_reduction <add>, %116, %cst_41 [1] : vector<16x32xf32> to vector<16xf32>
    %118 = vector.shape_cast %117 : vector<16xf32> to vector<16x1xf32>
    %cst_42 = arith.constant 3.200000e+01 : f32
    %119 = vector.broadcast %cst_42 : f32 to vector<16x1xf32>
    %120 = arith.divf %118, %119 : vector<16x1xf32>
    %121 = vector.broadcast %113 : vector<16x1xf32> to vector<16x32xf32>
    %122 = arith.subf %107, %121 : vector<16x32xf32>
    %cst_43 = arith.constant 9.99999974E-6 : f32
    %123 = vector.broadcast %cst_43 : f32 to vector<16x1xf32>
    %124 = arith.addf %120, %123 : vector<16x1xf32>
    %125 = math.rsqrt %124 : vector<16x1xf32>
    %126 = vector.broadcast %125 : vector<16x1xf32> to vector<16x32xf32>
    %127 = arith.mulf %122, %126 : vector<16x32xf32>
    %128 = vector.broadcast %108 : vector<1x32xf32> to vector<16x32xf32>
    %129 = arith.mulf %127, %128 : vector<16x32xf32>
    %130 = vector.broadcast %109 : vector<1x32xf32> to vector<16x32xf32>
    %131 = arith.addf %129, %130 : vector<16x32xf32>
    %132 = arith.truncf %131 : vector<16x32xf32> to vector<16x32xbf16>
    %c0_44 = arith.constant 0 : index
    %c0_45 = arith.constant 0 : index
    %133 = vector.load %arg9[%c0_44, %c0_45] : memref<32x64xbf16, #tpu.memory_space<vmem>>, vector<32x64xbf16>
    %cst_46 = arith.constant dense<0.000000e+00> : vector<16x64xf32>
    %134 = tpu.matmul %132, %133, %cst_46 {dimension_numbers = #tpu.dot_dimension_numbers<[1], [0], [0], [1], [0, 0, 1, 1], [], []>} : vector<16x32xbf16>, vector<32x64xbf16>, vector<16x64xf32> -> vector<16x64xf32>
    %c0_47 = arith.constant 0 : index
    %c0_48 = arith.constant 0 : index
    %135 = vector.load %arg10[%c0_47, %c0_48] : memref<1x64xf32, #tpu.memory_space<vmem>>, vector<1x64xf32>
    %136 = vector.broadcast %135 : vector<1x64xf32> to vector<16x64xf32>
    %137 = arith.addf %134, %136 : vector<16x64xf32>
    %cst_49 = arith.constant 0.000000e+00 : f32
    %138 = vector.broadcast %cst_49 : f32 to vector<16x64xf32>
    %139 = arith.maximumf %137, %138 : vector<16x64xf32>
    %140 = arith.truncf %139 : vector<16x64xf32> to vector<16x64xbf16>
    %c0_50 = arith.constant 0 : index
    %c0_51 = arith.constant 0 : index
    %141 = vector.load %arg11[%c0_50, %c0_51] : memref<64x32xbf16, #tpu.memory_space<vmem>>, vector<64x32xbf16>
    %cst_52 = arith.constant dense<0.000000e+00> : vector<16x32xf32>
    %142 = tpu.matmul %140, %141, %cst_52 {dimension_numbers = #tpu.dot_dimension_numbers<[1], [0], [0], [1], [0, 0, 1, 1], [], []>} : vector<16x64xbf16>, vector<64x32xbf16>, vector<16x32xf32> -> vector<16x32xf32>
    %c0_53 = arith.constant 0 : index
    %c0_54 = arith.constant 0 : index
    %143 = vector.load %arg12[%c0_53, %c0_54] : memref<1x32xf32, #tpu.memory_space<vmem>>, vector<1x32xf32>
    %144 = vector.broadcast %143 : vector<1x32xf32> to vector<16x32xf32>
    %145 = arith.addf %142, %144 : vector<16x32xf32>
    %146 = arith.addf %131, %145 : vector<16x32xf32>
    %c0_55 = arith.constant 0 : index
    %c0_56 = arith.constant 0 : index
    %147 = vector.load %arg13[%c0_55, %c0_56] : memref<1x32xf32, #tpu.memory_space<vmem>>, vector<1x32xf32>
    %c0_57 = arith.constant 0 : index
    %c0_58 = arith.constant 0 : index
    %148 = vector.load %arg14[%c0_57, %c0_58] : memref<1x32xf32, #tpu.memory_space<vmem>>, vector<1x32xf32>
    %cst_59 = arith.constant dense<0.000000e+00> : vector<16xf32>
    %149 = vector.multi_reduction <add>, %146, %cst_59 [1] : vector<16x32xf32> to vector<16xf32>
    %150 = vector.shape_cast %149 : vector<16xf32> to vector<16x1xf32>
    %cst_60 = arith.constant 3.200000e+01 : f32
    %151 = vector.broadcast %cst_60 : f32 to vector<16x1xf32>
    %152 = arith.divf %150, %151 : vector<16x1xf32>
    %153 = vector.broadcast %152 : vector<16x1xf32> to vector<16x32xf32>
    %154 = arith.subf %146, %153 : vector<16x32xf32>
    %155 = arith.mulf %154, %154 : vector<16x32xf32>
    %cst_61 = arith.constant dense<0.000000e+00> : vector<16xf32>
    %156 = vector.multi_reduction <add>, %155, %cst_61 [1] : vector<16x32xf32> to vector<16xf32>
    %157 = vector.shape_cast %156 : vector<16xf32> to vector<16x1xf32>
    %cst_62 = arith.constant 3.200000e+01 : f32
    %158 = vector.broadcast %cst_62 : f32 to vector<16x1xf32>
    %159 = arith.divf %157, %158 : vector<16x1xf32>
    %160 = vector.broadcast %152 : vector<16x1xf32> to vector<16x32xf32>
    %161 = arith.subf %146, %160 : vector<16x32xf32>
    %cst_63 = arith.constant 9.99999974E-6 : f32
    %162 = vector.broadcast %cst_63 : f32 to vector<16x1xf32>
    %163 = arith.addf %159, %162 : vector<16x1xf32>
    %164 = math.rsqrt %163 : vector<16x1xf32>
    %165 = vector.broadcast %164 : vector<16x1xf32> to vector<16x32xf32>
    %166 = arith.mulf %161, %165 : vector<16x32xf32>
    %167 = vector.broadcast %147 : vector<1x32xf32> to vector<16x32xf32>
    %168 = arith.mulf %166, %167 : vector<16x32xf32>
    %169 = vector.broadcast %148 : vector<1x32xf32> to vector<16x32xf32>
    %170 = arith.addf %168, %169 : vector<16x32xf32>
    %171 = vector.shape_cast %170 : vector<16x32xf32> to vector<2x8x32xf32>
    %172 = arith.truncf %171 : vector<2x8x32xf32> to vector<2x8x32xbf16>
    %c0_64 = arith.constant 0 : index
    %c0_65 = arith.constant 0 : index
    %c0_66 = arith.constant 0 : index
    %173 = vector.load %arg15[%c0_64, %c0_65, %c0_66] : memref<2x8x32xbf16, #tpu.memory_space<vmem>>, vector<2x8x32xbf16>
    tpu.vector_store %arg15[%c0_64, %c0_65, %c0_66], %172 {strides = array<i32>} : memref<2x8x32xbf16, #tpu.memory_space<vmem>>, vector<2x8x32xbf16>,
    return
  }
  func.func @transform_0(%arg0: i32) -> (i32, i32, i32) {
    %c0_i32 = arith.constant 0 : i32
    %c0_i32_0 = arith.constant 0 : i32
    %c0_i32_1 = arith.constant 0 : i32
    return %arg0, %c0_i32, %c0_i32_0 : i32, i32, i32
  }
  func.func @transform_1(%arg0: i32) -> (i32, i32) {
    %c0_i32 = arith.constant 0 : i32
    %c0_i32_0 = arith.constant 0 : i32
    return %arg0, %c0_i32 : i32, i32
  }
  func.func @transform_2(%arg0: i32) -> (i32, i32) {
    %c0_i32 = arith.constant 0 : i32
    %c0_i32_0 = arith.constant 0 : i32
    %c0_i32_1 = arith.constant 0 : i32
    return %c0_i32, %c0_i32_0 : i32, i32
  }
  func.func @transform_3(%arg0: i32) -> (i32, i32) {
    %c0_i32 = arith.constant 0 : i32
    %c0_i32_0 = arith.constant 0 : i32
    %c0_i32_1 = arith.constant 0 : i32
    return %c0_i32, %c0_i32_0 : i32, i32
  }
  func.func @transform_4(%arg0: i32) -> (i32, i32) {
    %c0_i32 = arith.constant 0 : i32
    %c0_i32_0 = arith.constant 0 : i32
    %c0_i32_1 = arith.constant 0 : i32
    return %c0_i32, %c0_i32_0 : i32, i32
  }
  func.func @transform_5(%arg0: i32) -> (i32, i32) {
    %c0_i32 = arith.constant 0 : i32
    %c0_i32_0 = arith.constant 0 : i32
    %c0_i32_1 = arith.constant 0 : i32
    return %c0_i32, %c0_i32_0 : i32, i32
  }
  func.func @transform_6(%arg0: i32) -> (i32, i32) {
    %c0_i32 = arith.constant 0 : i32
    %c0_i32_0 = arith.constant 0 : i32
    %c0_i32_1 = arith.constant 0 : i32
    return %c0_i32, %c0_i32_0 : i32, i32
  }
  func.func @transform_7(%arg0: i32) -> (i32, i32) {
    %c0_i32 = arith.constant 0 : i32
    %c0_i32_0 = arith.constant 0 : i32
    %c0_i32_1 = arith.constant 0 : i32
    return %c0_i32, %c0_i32_0 : i32, i32
  }
  func.func @transform_8(%arg0: i32) -> (i32, i32) {
    %c0_i32 = arith.constant 0 : i32
    %c0_i32_0 = arith.constant 0 : i32
    %c0_i32_1 = arith.constant 0 : i32
    return %c0_i32, %c0_i32_0 : i32, i32
  }
  func.func @transform_9(%arg0: i32) -> (i32, i32) {
    %c0_i32 = arith.constant 0 : i32
    %c0_i32_0 = arith.constant 0 : i32
    %c0_i32_1 = arith.constant 0 : i32
    return %c0_i32, %c0_i32_0 : i32, i32
  }
  func.func @transform_10(%arg0: i32) -> (i32, i32) {
    %c0_i32 = arith.constant 0 : i32
    %c0_i32_0 = arith.constant 0 : i32
    %c0_i32_1 = arith.constant 0 : i32
    return %c0_i32, %c0_i32_0 : i32, i32
  }
  func.func @transform_11(%arg0: i32) -> (i32, i32) {
    %c0_i32 = arith.constant 0 : i32
    %c0_i32_0 = arith.constant 0 : i32
    %c0_i32_1 = arith.constant 0 : i32
    return %c0_i32, %c0_i32_0 : i32, i32
  }
  func.func @transform_12(%arg0: i32) -> (i32, i32) {
    %c0_i32 = arith.constant 0 : i32
    %c0_i32_0 = arith.constant 0 : i32
    %c0_i32_1 = arith.constant 0 : i32
    return %c0_i32, %c0_i32_0 : i32, i32
  }
  func.func @transform_13(%arg0: i32) -> (i32, i32) {
    %c0_i32 = arith.constant 0 : i32
    %c0_i32_0 = arith.constant 0 : i32
    %c0_i32_1 = arith.constant 0 : i32
    return %c0_i32, %c0_i32_0 : i32, i32
  }
  func.func @transform_14(%arg0: i32) -> (i32, i32, i32) {
    %c0_i32 = arith.constant 0 : i32
    %c0_i32_0 = arith.constant 0 : i32
    %c0_i32_1 = arith.constant 0 : i32
    return %arg0, %c0_i32, %c0_i32_0 : i32, i32, i32
  }
}

</mosaic_0001>

<llo_original>
// kernel: tpu_custom_call.1
$region0: #{tpu_custom_call.1}
  #allocation0 [shape = 'u32[]', space=smem, size = 0x4, offset = 0x4, fixed_abs, tag = 'smem constant byte address 0x4 - core index']
  #allocation1 [shape = 'u32[144,128]{1,0:T(1,128)}', space=vmem, size = 0x12000, scoped, tag = 'internal scratch']
  %s0 = inlined_call_operand.hbm [shape: bf16[2,8,32], index: 0, kind: input, shape index: {}]
  %s1 = inlined_call_operand.vmem [shape: f32[2,8], index: 1, kind: input, shape index: {}]
  %s2 = inlined_call_operand.vmem [shape: bf16[32,96], index: 2, kind: input, shape index: {}]
  %s3 = inlined_call_operand.vmem [shape: f32[1,96], index: 3, kind: input, shape index: {}]
  %s4 = inlined_call_operand.vmem [shape: bf16[32,32], index: 4, kind: input, shape index: {}]
  %s5 = inlined_call_operand.vmem [shape: f32[1,32], index: 5, kind: input, shape index: {}]
  %s6 = inlined_call_operand.vmem [shape: f32[1,32], index: 6, kind: input, shape index: {}]
  %s7 = inlined_call_operand.vmem [shape: f32[1,32], index: 7, kind: input, shape index: {}]
  %s8 = inlined_call_operand.vmem [shape: bf16[32,64], index: 8, kind: input, shape index: {}]
  %s9 = inlined_call_operand.vmem [shape: f32[1,64], index: 9, kind: input, shape index: {}]
  %s10 = inlined_call_operand.vmem [shape: bf16[64,32], index: 10, kind: input, shape index: {}]
  %s11 = inlined_call_operand.vmem [shape: f32[1,32], index: 11, kind: input, shape index: {}]
  %s12 = inlined_call_operand.vmem [shape: f32[1,32], index: 12, kind: input, shape index: {}]
  %s13 = inlined_call_operand.vmem [shape: f32[1,32], index: 13, kind: input, shape index: {}]
  %s14 = inlined_call_operand.hbm [shape: bf16[2,8,32], index: 14, kind: output, shape index: {}]
  %s15 = sld [smem:[#allocation0]]
  $region70: #{tpu_custom_call.1} parent=0
    _
  %s17 = ssub.s32 1, %s15
  %s18 = scalar_select 0, %s17, %s15
  $region1: #{tpu_custom_call.1} parent=0
    #allocation2 [shape = 'u8[4096]{0}', space=vmem, size = 0x1000, scoped, tag = 'input window, operand 0, single buffered']
    #allocation3 [shape = 's32[1]{0}', space=sflag, size = 0x4, scoped, tag = 'scoped memory for tpu_custom_call.1']
    #allocation4 [shape = 's32[1]{0}', space=sflag, size = 0x4, scoped, tag = 'scoped memory for tpu_custom_call.1']
    #allocation5 [shape = 'u8[4096]{0}', space=vmem, size = 0x1000, scoped, tag = 'output window, operand 0, single buffered']
    %19 = vsyncpa [#allocation3], 0
    %20 = vsyncpa [#allocation4], 0
    // Predicated region
    $region2: #{tpu_custom_call.1} parent=1 // pred_check
      _
    $region3: #{tpu_custom_call.1} parent=1 // pred_check_branch
      %22 = sbr.rel (0) target = $region5
    $region4: #{tpu_custom_call.1} parent=1 // pred_region
      %s24 = ssub.s32 128, 128
      %25 = vsyncadd [#allocation3], %s24
      %s26 = sshll.u32 [#allocation2], 4
      %s27 = int_to_ptr.vmem [resolvable:$true] %s26
      %32 = dma.hbm_to_vmem [thread:$0]  %s0, 128, %s27, [#allocation3], 64, 64, 4
    $region5: #{tpu_custom_call.1} parent=1 // pred_fallthru
      _
    // Predicated region
    $region6: #{tpu_custom_call.1} parent=1 // pred_check
      _
    $region7: #{tpu_custom_call.1} parent=1 // pred_check_branch
      %34 = sbr.rel (0) target = $region9
    $region8: #{tpu_custom_call.1} parent=1 // pred_region
      _
    $region9: #{tpu_custom_call.1} parent=1 // pred_fallthru
      _
    // Predicated region
    $region10: #{tpu_custom_call.1} parent=1 // pred_check
      _
    $region11: #{tpu_custom_call.1} parent=1 // pred_check_branch
      %36 = sbr.rel (0) target = $region13
    $region12: #{tpu_custom_call.1} parent=1 // pred_region
      _
    $region13: #{tpu_custom_call.1} parent=1 // pred_fallthru
      _
    // Predicated region
    $region14: #{tpu_custom_call.1} parent=1 // pred_check
      _
    $region15: #{tpu_custom_call.1} parent=1 // pred_check_branch
      %38 = sbr.rel (0) target = $region17
    $region16: #{tpu_custom_call.1} parent=1 // pred_region
      _
    $region17: #{tpu_custom_call.1} parent=1 // pred_fallthru
      _
    // Predicated region
    $region18: #{tpu_custom_call.1} parent=1 // pred_check
      _
    $region19: #{tpu_custom_call.1} parent=1 // pred_check_branch
      %40 = sbr.rel (0) target = $region21
    $region20: #{tpu_custom_call.1} parent=1 // pred_region
      _
    $region21: #{tpu_custom_call.1} parent=1 // pred_fallthru
      _
    // Predicated region
    $region22: #{tpu_custom_call.1} parent=1 // pred_check
      _
    $region23: #{tpu_custom_call.1} parent=1 // pred_check_branch
      %42 = sbr.rel (0) target = $region25
    $region24: #{tpu_custom_call.1} parent=1 // pred_region
      _
    $region25: #{tpu_custom_call.1} parent=1 // pred_fallthru
      _
    // Predicated region
    $region26: #{tpu_custom_call.1} parent=1 // pred_check
      _
    $region27: #{tpu_custom_call.1} parent=1 // pred_check_branch
      %44 = sbr.rel (0) target = $region29
    $region28: #{tpu_custom_call.1} parent=1 // pred_region
      _
    $region29: #{tpu_custom_call.1} parent=1 // pred_fallthru
      _
    // Predicated region
    $region30: #{tpu_custom_call.1} parent=1 // pred_check
      _
    $region31: #{tpu_custom_call.1} parent=1 // pred_check_branch
      %46 = sbr.rel (0) target = $region33
    $region32: #{tpu_custom_call.1} parent=1 // pred_region
      _
    $region33: #{tpu_custom_call.1} parent=1 // pred_fallthru
      _
    // Predicated region
    $region34: #{tpu_custom_call.1} parent=1 // pred_check
      _
    $region35: #{tpu_custom_call.1} parent=1 // pred_check_branch
      %48 = sbr.rel (0) target = $region37
    $region36: #{tpu_custom_call.1} parent=1 // pred_region
      _
    $region37: #{tpu_custom_call.1} parent=1 // pred_fallthru
      _
    // Predicated region
    $region38: #{tpu_custom_call.1} parent=1 // pred_check
      _
    $region39: #{tpu_custom_call.1} parent=1 // pred_check_branch
      %50 = sbr.rel (0) target = $region41
    $region40: #{tpu_custom_call.1} parent=1 // pred_region
      _
    $region41: #{tpu_custom_call.1} parent=1 // pred_fallthru
      _
    // Predicated region
    $region42: #{tpu_custom_call.1} parent=1 // pred_check
      _
    $region43: #{tpu_custom_call.1} parent=1 // pred_check_branch
      %52 = sbr.rel (0) target = $region45
    $region44: #{tpu_custom_call.1} parent=1 // pred_region
      _
    $region45: #{tpu_custom_call.1} parent=1 // pred_fallthru
      _
    // Predicated region
    $region46: #{tpu_custom_call.1} parent=1 // pred_check
      _
    $region47: #{tpu_custom_call.1} parent=1 // pred_check_branch
      %54 = sbr.rel (0) target = $region49
    $region48: #{tpu_custom_call.1} parent=1 // pred_region
      _
    $region49: #{tpu_custom_call.1} parent=1 // pred_fallthru
      _
    // Predicated region
    $region50: #{tpu_custom_call.1} parent=1 // pred_check
      _
    $region51: #{tpu_custom_call.1} parent=1 // pred_check_branch
      %56 = sbr.rel (0) target = $region53
    $region52: #{tpu_custom_call.1} parent=1 // pred_region
      _
    $region53: #{tpu_custom_call.1} parent=1 // pred_fallthru
      _
    // Predicated region
    $region54: #{tpu_custom_call.1} parent=1 // pred_check
      _
    $region55: #{tpu_custom_call.1} parent=1 // pred_check_branch
      %58 = sbr.rel (0) target = $region57
    $region56: #{tpu_custom_call.1} parent=1 // pred_region
      _
    $region57: #{tpu_custom_call.1} parent=1 // pred_fallthru
      _
    // Predicated region
    $region58: #{tpu_custom_call.1} parent=1 // pred_check
      _
    $region59: #{tpu_custom_call.1} parent=1 // pred_check_branch
      %60 = sbr.rel (0) target = $region61
    $region60: #{tpu_custom_call.1} parent=1 // pred_region
      %61 = dma.done [#allocation3], 128
    $region61: #{tpu_custom_call.1} parent=1 // pred_fallthru
      _
    %v63 = vld [vmem:[#allocation2] sm:$0xf]
    %v64 = vld [vmem:[#allocation2 + $0x4] sm:$0xf]
    %v65 = vunpack.c.l.bf16 %v63
    %v66 = vunpack.c.l.bf16 %v64
    %v67 = vld [vmem:[%s2] sm:$0xf]
    %v68 = vld [vmem:[%s2 + $0x4] sm:$0xf]
    %v69 = vld [vmem:[%s2 + $0x8] sm:$0xf]
    %v70 = vld [vmem:[%s2 + $0xc] sm:$0xf]
    %v71 = vld [vmem:[%s3] sm:$0x1]
    %v73 = vlaneseq
    %v74 = vshrl.u32 %v73, 7
    %v75 = vsub.s32 0, %v74
    %v76 = vrot.slane %v71, %v75
    %v80 = vunpack.c.l.b16 %v63
    %v81 = vunpack.c.l.b16 %v64
    %v82 = vpack.c.b16 %v81, %v80
    %v87 = vunpack.c.l.b16 %v67
    %v88 = vunpack.c.l.b16 %v68
    %v89 = vunpack.c.l.b16 %v69
    %v90 = vunpack.c.l.b16 %v70
    %v91 = vpack.c.b16 %v88, %v87
    %v92 = vpack.c.b16 %v90, %v89
    %vm95 = vcmask 261120
    %v97 = vsel %vm95, %v82, 0
    %99 = vmatprep.subr.bf16.mxu0 0
    %100 = vmatpush1.bf16.msra.mxu0 %v91
    %101 = vmatprep.subr.bf16.mxu0 0
    %102 = vmatpush1.bf16.msra.mxu0 %v92
    %103 = vmatprep.subr.bf16.mxu0 0
    %104 = vmatpush1.bf16.msra.mxu0 0
    %105 = vmatprep.subr.bf16.mxu0 0
    %106 = vmatpush1.bf16.msra.mxu0 0
    %107 = vmatprep.subr.bf16.mxu0 0
    %108 = vmatpush1.bf16.msra.mxu0 0
    %109 = vmatprep.subr.bf16.mxu0 0
    %110 = vmatpush1.bf16.msra.mxu0 0
    %111 = vmatprep.subr.bf16.mxu0 0
    %112 = vmatpush1.bf16.msra.mxu0 0
    %113 = vmatprep.subr.bf16.mxu0 0
    %114 = vmatpush1.bf16.msra.mxu0 0
    %115 = vmatprep.subr.bf16.mxu0 0
    %116 = vmatpush1.bf16.msra.mxu0 0
    %117 = vmatprep.subr.bf16.mxu0 0
    %118 = vmatpush1.bf16.msra.mxu0 0
    %119 = vmatprep.subr.bf16.mxu0 0
    %120 = vmatpush1.bf16.msra.mxu0 0
    %121 = vmatprep.subr.bf16.mxu0 0
    %122 = vmatpush1.bf16.msra.mxu0 0
    %123 = vmatprep.subr.bf16.mxu0 0
    %124 = vmatpush1.bf16.msra.mxu0 0
    %125 = vmatprep.subr.bf16.mxu0 0
    %126 = vmatpush1.bf16.msra.mxu0 0
    %127 = vmatprep.subr.bf16.mxu0 0
    %128 = vmatpush1.bf16.msra.mxu0 0
    %129 = vmatprep.subr.bf16.mxu0 0
    %130 = vmatpush1.bf16.msra.mxu0 0
    %131 = vmatprep.mubr.bf16.mxu0 0
    %132 = vmatmul.mubr.bf16.gmra.mrb[0].mxu0 %v97
    %v133 = vpop.f32.mrb[0].mxu0
    %v134 = vadd.f32 %v76, %v133
    %v135 = vpop.f32.mrb[0].mxu0
    %v136 = vpop.f32.mrb[0].mxu0
    %v137 = vadd.f32 %v76, %v136
    %v138 = vpop.f32.mrb[0].mxu0
    %139 = vdwg.mxu0
    %v140 = vpack.c.bf16 %v134, %v134
    %v141 = vpack.c.bf16 %v137, %v137
    %v142 = vld [vmem:[%s1] sm:$0x3]
    %v143 = vsub.f32 1.0, %v142
    %v144 = vmul.f32 %v143, -1e+09
    %v147 = vunpack.c.l.s4 1966171168
    %v148 = vunpack.c.0.s8 %v147
    %v149 = vlaneseq
    %v150 = vshrl.u32 %v149, 7
    %v151 = vsub.s32 %v148, %v150
    %v152 = vrot.slane %v144, %v151
    %v153 = vcombine.high %v152, %v152
    %v155 = vunpack.c.l.s4 1966171168
    %v156 = vunpack.c.0.s8 %v155
    %v157 = vlaneseq
    %v158 = vshrl.u32 %v157, 7
    %v159 = vsub.s32 %v156, %v158
    %v160 = vrot.slane %v152, %v159
    %v162 = vunpack.c.l.s4 1966171168
    %v163 = vunpack.c.0.s8 %v162
    %v164 = vlaneseq
    %v165 = vshrl.u32 %v164, 7
    %v166 = vsub.s32 %v163, %v165
    %v167 = vrot.slane %v153, %v166
    %169 = vrot.lane.b32.xlu0 %v140, 96
    %v170 = vpop.permute.xlu0 %169
    %vm171 = vcmask 64512
    %v173 = vsel %vm171, %v140, 0
    %v176 = vsel %vm171, %v170, 0
    %178 = vmatprep.subr.bf16.mxu0 0
    %179 = vmatpush1.bf16.xpose.msra.mxu0 %v176
    %180 = vmatprep.subr.bf16.mxu0 0
    %181 = vmatpush1.bf16.xpose.msra.mxu0 0
    %182 = vmatprep.subr.bf16.mxu0 0
    %183 = vmatpush1.bf16.xpose.msra.mxu0 0
    %184 = vmatprep.subr.bf16.mxu0 0
    %185 = vmatpush1.bf16.xpose.msra.mxu0 0
    %186 = vmatprep.subr.bf16.mxu0 0
    %187 = vmatpush1.bf16.xpose.msra.mxu0 0
    %188 = vmatprep.subr.bf16.mxu0 0
    %189 = vmatpush1.bf16.xpose.msra.mxu0 0
    %190 = vmatprep.subr.bf16.mxu0 0
    %191 = vmatpush1.bf16.xpose.msra.mxu0 0
    %192 = vmatprep.subr.bf16.mxu0 0
    %193 = vmatpush1.bf16.xpose.msra.mxu0 0
    %194 = vmatprep.subr.bf16.mxu0 0
    %195 = vmatpush1.bf16.xpose.msra.mxu0 0
    %196 = vmatprep.subr.bf16.mxu0 0
    %197 = vmatpush1.bf16.xpose.msra.mxu0 0
    %198 = vmatprep.subr.bf16.mxu0 0
    %199 = vmatpush1.bf16.xpose.msra.mxu0 0
    %200 = vmatprep.subr.bf16.mxu0 0
    %201 = vmatpush1.bf16.xpose.msra.mxu0 0
    %202 = vmatprep.subr.bf16.mxu0 0
    %203 = vmatpush1.bf16.xpose.msra.mxu0 0
    %204 = vmatprep.subr.bf16.mxu0 0
    %205 = vmatpush1.bf16.xpose.msra.mxu0 0
    %206 = vmatprep.subr.bf16.mxu0 0
    %207 = vmatpush1.bf16.xpose.msra.mxu0 0
    %208 = vmatprep.subr.bf16.mxu0 0
    %209 = vmatpush1.bf16.xpose.msra.mxu0 0
    %210 = vmatprep.mubr.bf16.mxu0 0
    %211 = vmatmul.mubr.bf16.gmra.mrb[0].mxu0 %v173
    %v212 = vpop.f32.mrb[0].mxu0
    %v213 = vadd.f32 0.0, %v212
    %v214 = vpop.f32.mrb[0].mxu0
    %v215 = vpop.f32.mrb[0].mxu0
    %v216 = vpop.f32.mrb[0].mxu0
    %217 = vdwg.mxu0
    %219 = vrot.lane.b32.xlu0 %v141, 96
    %v220 = vpop.permute.xlu0 %219
    %v222 = vsel %vm171, %v141, 0
    %v225 = vsel %vm171, %v220, 0
    %227 = vmatprep.subr.bf16.mxu0 0
    %228 = vmatpush1.bf16.xpose.msra.mxu0 %v225
    %229 = vmatprep.subr.bf16.mxu0 0
    %230 = vmatpush1.bf16.xpose.msra.mxu0 0
    %231 = vmatprep.subr.bf16.mxu0 0
    %232 = vmatpush1.bf16.xpose.msra.mxu0 0
    %233 = vmatprep.subr.bf16.mxu0 0
    %234 = vmatpush1.bf16.xpose.msra.mxu0 0
    %235 = vmatprep.subr.bf16.mxu0 0
    %236 = vmatpush1.bf16.xpose.msra.mxu0 0
    %237 = vmatprep.subr.bf16.mxu0 0
    %238 = vmatpush1.bf16.xpose.msra.mxu0 0
    %239 = vmatprep.subr.bf16.mxu0 0
    %240 = vmatpush1.bf16.xpose.msra.mxu0 0
    %241 = vmatprep.subr.bf16.mxu0 0
    %242 = vmatpush1.bf16.xpose.msra.mxu0 0
    %243 = vmatprep.subr.bf16.mxu0 0
    %244 = vmatpush1.bf16.xpose.msra.mxu0 0
    %245 = vmatprep.subr.bf16.mxu0 0
    %246 = vmatpush1.bf16.xpose.msra.mxu0 0
    %247 = vmatprep.subr.bf16.mxu0 0
    %248 = vmatpush1.bf16.xpose.msra.mxu0 0
    %249 = vmatprep.subr.bf16.mxu0 0
    %250 = vmatpush1.bf16.xpose.msra.mxu0 0
    %251 = vmatprep.subr.bf16.mxu0 0
    %252 = vmatpush1.bf16.xpose.msra.mxu0 0
    %253 = vmatprep.subr.bf16.mxu0 0
    %254 = vmatpush1.bf16.xpose.msra.mxu0 0
    %255 = vmatprep.subr.bf16.mxu0 0
    %256 = vmatpush1.bf16.xpose.msra.mxu0 0
    %257 = vmatprep.subr.bf16.mxu0 0
    %258 = vmatpush1.bf16.xpose.msra.mxu0 0
    %259 = vmatprep.mubr.bf16.mxu0 0
    %260 = vmatmul.mubr.bf16.gmra.mrb[0].mxu0 %v222
    %v261 = vpop.f32.mrb[0].mxu0
    %v262 = vadd.f32 0.0, %v261
    %v263 = vpop.f32.mrb[0].mxu0
    %v264 = vpop.f32.mrb[0].mxu0
    %v265 = vpop.f32.mrb[0].mxu0
    %266 = vdwg.mxu0
    %v267 = vmul.f32 %v213, 0.35355338
    %v268 = vmul.f32 %v262, 0.35355338
    %v269 = vlaneseq
    %v270 = vshrl.u32 %v269, 7
    %v271 = vsub.s32 0, %v270
    %v272 = vrot.slane %v160, %v271
    %v273 = vlaneseq
    %v274 = vshrl.u32 %v273, 7
    %v275 = vsub.s32 0, %v274
    %v276 = vrot.slane %v167, %v275
    %v279 = vadd.f32 %v267, %v272
    %v280 = vadd.f32 %v268, %v276
    %v281 = vsel %vm171, %v279, -inf
    %282 = vmax.xlane.f32.xlu0 %v281
    %v283 = vpop.xlane.xlu0 %282
    %v284 = vsel %vm171, %v280, -inf
    %285 = vmax.xlane.f32.xlu0 %v284
    %v286 = vpop.xlane.xlu0 %285
    %v287 = vsub.f32 %v279, %v283
    %v288 = vsub.f32 %v280, %v286
    %v289 = vmul.f32 %v287, 1.442695
    %v290 = vpow.pop %v289
    %v291 = vmul.f32 %v288, 1.442695
    %v292 = vpow.pop %v291
    %v293 = vsel %vm171, %v290, 0.0
    %294 = vadd.xlane.f32.xlu0 %v293
    %v295 = vpop.xlane.xlu0 %294
    %v296 = vsel %vm171, %v292, 0.0
    %297 = vadd.xlane.f32.xlu0 %v296
    %v298 = vpop.xlane.xlu0 %297
    %v299 = vrcp.pop %v295
    %v300 = vrcp.pop %v298
    %v301 = vmul.f32 %v290, %v299
    %v302 = vmul.f32 %v292, %v300
    %v303 = vpack.c.bf16 %v301, %v301
    %v304 = vpack.c.bf16 %v302, %v302
    %305 = vrot.lane.b32.xlu0 %v140, 64
    %v306 = vpop.permute.xlu0 %305
    %v308 = vsel %vm171, %v303, 0
    %vm310 = vcmask 1043456
    %v312 = vsel %vm310, %v306, 0
    %314 = vmatprep.subr.bf16.mxu0 0
    %315 = vmatpush1.bf16.msra.mxu0 %v312
    %316 = vmatprep.subr.bf16.mxu0 0
    %317 = vmatpush1.bf16.msra.mxu0 0
    %318 = vmatprep.subr.bf16.mxu0 0
    %319 = vmatpush1.bf16.msra.mxu0 0
    %320 = vmatprep.subr.bf16.mxu0 0
    %321 = vmatpush1.bf16.msra.mxu0 0
    %322 = vmatprep.subr.bf16.mxu0 0
    %323 = vmatpush1.bf16.msra.mxu0 0
    %324 = vmatprep.subr.bf16.mxu0 0
    %325 = vmatpush1.bf16.msra.mxu0 0
    %326 = vmatprep.subr.bf16.mxu0 0
    %327 = vmatpush1.bf16.msra.mxu0 0
    %328 = vmatprep.subr.bf16.mxu0 0
    %329 = vmatpush1.bf16.msra.mxu0 0
    %330 = vmatprep.subr.bf16.mxu0 0
    %331 = vmatpush1.bf16.msra.mxu0 0
    %332 = vmatprep.subr.bf16.mxu0 0
    %333 = vmatpush1.bf16.msra.mxu0 0
    %334 = vmatprep.subr.bf16.mxu0 0
    %335 = vmatpush1.bf16.msra.mxu0 0
    %336 = vmatprep.subr.bf16.mxu0 0
    %337 = vmatpush1.bf16.msra.mxu0 0
    %338 = vmatprep.subr.bf16.mxu0 0
    %339 = vmatpush1.bf16.msra.mxu0 0
    %340 = vmatprep.subr.bf16.mxu0 0
    %341 = vmatpush1.bf16.msra.mxu0 0
    %342 = vmatprep.subr.bf16.mxu0 0
    %343 = vmatpush1.bf16.msra.mxu0 0
    %344 = vmatprep.subr.bf16.mxu0 0
    %345 = vmatpush1.bf16.msra.mxu0 0
    %346 = vmatprep.mubr.bf16.mxu0 0
    %347 = vmatmul.mubr.bf16.gmra.mrb[0].mxu0 %v308
    %v348 = vpop.f32.mrb[0].mxu0
    %v349 = vadd.f32 0.0, %v348
    %v350 = vpop.f32.mrb[0].mxu0
    %v351 = vpop.f32.mrb[0].mxu0
    %v352 = vpop.f32.mrb[0].mxu0
    %353 = vdwg.mxu0
    %354 = vrot.lane.b32.xlu0 %v141, 64
    %v355 = vpop.permute.xlu0 %354
    %v357 = vsel %vm171, %v304, 0
    %v360 = vsel %vm310, %v355, 0
    %362 = vmatprep.subr.bf16.mxu0 0
    %363 = vmatpush1.bf16.msra.mxu0 %v360
    %364 = vmatprep.subr.bf16.mxu0 0
    %365 = vmatpush1.bf16.msra.mxu0 0
    %366 = vmatprep.subr.bf16.mxu0 0
    %367 = vmatpush1.bf16.msra.mxu0 0
    %368 = vmatprep.subr.bf16.mxu0 0
    %369 = vmatpush1.bf16.msra.mxu0 0
    %370 = vmatprep.subr.bf16.mxu0 0
    %371 = vmatpush1.bf16.msra.mxu0 0
    %372 = vmatprep.subr.bf16.mxu0 0
    %373 = vmatpush1.bf16.msra.mxu0 0
    %374 = vmatprep.subr.bf16.mxu0 0
    %375 = vmatpush1.bf16.msra.mxu0 0
    %376 = vmatprep.subr.bf16.mxu0 0
    %377 = vmatpush1.bf16.msra.mxu0 0
    %378 = vmatprep.subr.bf16.mxu0 0
    %379 = vmatpush1.bf16.msra.mxu0 0
    %380 = vmatprep.subr.bf16.mxu0 0
    %381 = vmatpush1.bf16.msra.mxu0 0
    %382 = vmatprep.subr.bf16.mxu0 0
    %383 = vmatpush1.bf16.msra.mxu0 0
    %384 = vmatprep.subr.bf16.mxu0 0
    %385 = vmatpush1.bf16.msra.mxu0 0
    %386 = vmatprep.subr.bf16.mxu0 0
    %387 = vmatpush1.bf16.msra.mxu0 0
    %388 = vmatprep.subr.bf16.mxu0 0
    %389 = vmatpush1.bf16.msra.mxu0 0
    %390 = vmatprep.subr.bf16.mxu0 0
    %391 = vmatpush1.bf16.msra.mxu0 0
    %392 = vmatprep.subr.bf16.mxu0 0
    %393 = vmatpush1.bf16.msra.mxu0 0
    %394 = vmatprep.mubr.bf16.mxu0 0
    %395 = vmatmul.mubr.bf16.gmra.mrb[0].mxu0 %v357
    %v396 = vpop.f32.mrb[0].mxu0
    %v397 = vadd.f32 0.0, %v396
    %v398 = vpop.f32.mrb[0].mxu0
    %v399 = vpop.f32.mrb[0].mxu0
    %v400 = vpop.f32.mrb[0].mxu0
    %401 = vdwg.mxu0
    %v402 = vpack.c.bf16 %v349, %v349
    %v403 = vpack.c.bf16 %v397, %v397
    %404 = vrot.lane.b32.xlu0 %v140, 120
    %v405 = vpop.permute.xlu0 %404
    %406 = vrot.lane.b32.xlu0 %v140, 88
    %v407 = vpop.permute.xlu0 %406
    %v409 = vsel %vm171, %v405, 0
    %v412 = vsel %vm171, %v407, 0
    %414 = vmatprep.subr.bf16.mxu0 0
    %415 = vmatpush1.bf16.xpose.msra.mxu0 %v412
    %416 = vmatprep.subr.bf16.mxu0 0
    %417 = vmatpush1.bf16.xpose.msra.mxu0 0
    %418 = vmatprep.subr.bf16.mxu0 0
    %419 = vmatpush1.bf16.xpose.msra.mxu0 0
    %420 = vmatprep.subr.bf16.mxu0 0
    %421 = vmatpush1.bf16.xpose.msra.mxu0 0
    %422 = vmatprep.subr.bf16.mxu0 0
    %423 = vmatpush1.bf16.xpose.msra.mxu0 0
    %424 = vmatprep.subr.bf16.mxu0 0
    %425 = vmatpush1.bf16.xpose.msra.mxu0 0
    %426 = vmatprep.subr.bf16.mxu0 0
    %427 = vmatpush1.bf16.xpose.msra.mxu0 0
    %428 = vmatprep.subr.bf16.mxu0 0
    %429 = vmatpush1.bf16.xpose.msra.mxu0 0
    %430 = vmatprep.subr.bf16.mxu0 0
    %431 = vmatpush1.bf16.xpose.msra.mxu0 0
    %432 = vmatprep.subr.bf16.mxu0 0
    %433 = vmatpush1.bf16.xpose.msra.mxu0 0
    %434 = vmatprep.subr.bf16.mxu0 0
    %435 = vmatpush1.bf16.xpose.msra.mxu0 0
    %436 = vmatprep.subr.bf16.mxu0 0
    %437 = vmatpush1.bf16.xpose.msra.mxu0 0
    %438 = vmatprep.subr.bf16.mxu0 0
    %439 = vmatpush1.bf16.xpose.msra.mxu0 0
    %440 = vmatprep.subr.bf16.mxu0 0
    %441 = vmatpush1.bf16.xpose.msra.mxu0 0
    %442 = vmatprep.subr.bf16.mxu0 0
    %443 = vmatpush1.bf16.xpose.msra.mxu0 0
    %444 = vmatprep.subr.bf16.mxu0 0
    %445 = vmatpush1.bf16.xpose.msra.mxu0 0
    %446 = vmatprep.mubr.bf16.mxu0 0
    %447 = vmatmul.mubr.bf16.gmra.mrb[0].mxu0 %v409
    %v448 = vpop.f32.mrb[0].mxu0
    %v449 = vadd.f32 0.0, %v448
    %v450 = vpop.f32.mrb[0].mxu0
    %v451 = vpop.f32.mrb[0].mxu0
    %v452 = vpop.f32.mrb[0].mxu0
    %453 = vdwg.mxu0
    %454 = vrot.lane.b32.xlu0 %v141, 120
    %v455 = vpop.permute.xlu0 %454
    %456 = vrot.lane.b32.xlu0 %v141, 88
    %v457 = vpop.permute.xlu0 %456
    %v459 = vsel %vm171, %v455, 0
    %v462 = vsel %vm171, %v457, 0
    %464 = vmatprep.subr.bf16.mxu0 0
    %465 = vmatpush1.bf16.xpose.msra.mxu0 %v462
    %466 = vmatprep.subr.bf16.mxu0 0
    %467 = vmatpush1.bf16.xpose.msra.mxu0 0
    %468 = vmatprep.subr.bf16.mxu0 0
    %469 = vmatpush1.bf16.xpose.msra.mxu0 0
    %470 = vmatprep.subr.bf16.mxu0 0
    %471 = vmatpush1.bf16.xpose.msra.mxu0 0
    %472 = vmatprep.subr.bf16.mxu0 0
    %473 = vmatpush1.bf16.xpose.msra.mxu0 0
    %474 = vmatprep.subr.bf16.mxu0 0
    %475 = vmatpush1.bf16.xpose.msra.mxu0 0
    %476 = vmatprep.subr.bf16.mxu0 0
    %477 = vmatpush1.bf16.xpose.msra.mxu0 0
    %478 = vmatprep.subr.bf16.mxu0 0
    %479 = vmatpush1.bf16.xpose.msra.mxu0 0
    %480 = vmatprep.subr.bf16.mxu0 0
    %481 = vmatpush1.bf16.xpose.msra.mxu0 0
    %482 = vmatprep.subr.bf16.mxu0 0
    %483 = vmatpush1.bf16.xpose.msra.mxu0 0
    %484 = vmatprep.subr.bf16.mxu0 0
    %485 = vmatpush1.bf16.xpose.msra.mxu0 0
    %486 = vmatprep.subr.bf16.mxu0 0
    %487 = vmatpush1.bf16.xpose.msra.mxu0 0
    %488 = vmatprep.subr.bf16.mxu0 0
    %489 = vmatpush1.bf16.xpose.msra.mxu0 0
    %490 = vmatprep.subr.bf16.mxu0 0
    %491 = vmatpush1.bf16.xpose.msra.mxu0 0
    %492 = vmatprep.subr.bf16.mxu0 0
    %493 = vmatpush1.bf16.xpose.msra.mxu0 0
    %494 = vmatprep.subr.bf16.mxu0 0
    %495 = vmatpush1.bf16.xpose.msra.mxu0 0
    %496 = vmatprep.mubr.bf16.mxu0 0
    %497 = vmatmul.mubr.bf16.gmra.mrb[0].mxu0 %v459
    %v498 = vpop.f32.mrb[0].mxu0
    %v499 = vadd.f32 0.0, %v498
    %v500 = vpop.f32.mrb[0].mxu0
    %v501 = vpop.f32.mrb[0].mxu0
    %v502 = vpop.f32.mrb[0].mxu0
    %503 = vdwg.mxu0
    %v504 = vmul.f32 %v449, 0.35355338
    %v505 = vmul.f32 %v499, 0.35355338
    %v506 = vadd.f32 %v504, %v272
    %v507 = vadd.f32 %v505, %v276
    %v508 = vsel %vm171, %v506, -inf
    %509 = vmax.xlane.f32.xlu0 %v508
    %v510 = vpop.xlane.xlu0 %509
    %v511 = vsel %vm171, %v507, -inf
    %512 = vmax.xlane.f32.xlu0 %v511
    %v513 = vpop.xlane.xlu0 %512
    %v514 = vsub.f32 %v506, %v510
    %v515 = vsub.f32 %v507, %v513
    %v516 = vmul.f32 %v514, 1.442695
    %v517 = vpow.pop %v516
    %v518 = vmul.f32 %v515, 1.442695
    %v519 = vpow.pop %v518
    %v520 = vsel %vm171, %v517, 0.0
    %521 = vadd.xlane.f32.xlu0 %v520
    %v522 = vpop.xlane.xlu0 %521
    %v523 = vsel %vm171, %v519, 0.0
    %524 = vadd.xlane.f32.xlu0 %v523
    %v525 = vpop.xlane.xlu0 %524
    %v526 = vrcp.pop %v522
    %v527 = vrcp.pop %v525
    %v528 = vmul.f32 %v517, %v526
    %v529 = vmul.f32 %v519, %v527
    %v530 = vpack.c.bf16 %v528, %v528
    %v531 = vpack.c.bf16 %v529, %v529
    %532 = vrot.lane.b32.xlu0 %v140, 56
    %v533 = vpop.permute.xlu0 %532
    %v535 = vsel %vm171, %v530, 0
    %v538 = vsel %vm310, %v533, 0
    %540 = vmatprep.subr.bf16.mxu0 0
    %541 = vmatpush1.bf16.msra.mxu0 %v538
    %542 = vmatprep.subr.bf16.mxu0 0
    %543 = vmatpush1.bf16.msra.mxu0 0
    %544 = vmatprep.subr.bf16.mxu0 0
    %545 = vmatpush1.bf16.msra.mxu0 0
    %546 = vmatprep.subr.bf16.mxu0 0
    %547 = vmatpush1.bf16.msra.mxu0 0
    %548 = vmatprep.subr.bf16.mxu0 0
    %549 = vmatpush1.bf16.msra.mxu0 0
    %550 = vmatprep.subr.bf16.mxu0 0
    %551 = vmatpush1.bf16.msra.mxu0 0
    %552 = vmatprep.subr.bf16.mxu0 0
    %553 = vmatpush1.bf16.msra.mxu0 0
    %554 = vmatprep.subr.bf16.mxu0 0
    %555 = vmatpush1.bf16.msra.mxu0 0
    %556 = vmatprep.subr.bf16.mxu0 0
    %557 = vmatpush1.bf16.msra.mxu0 0
    %558 = vmatprep.subr.bf16.mxu0 0
    %559 = vmatpush1.bf16.msra.mxu0 0
    %560 = vmatprep.subr.bf16.mxu0 0
    %561 = vmatpush1.bf16.msra.mxu0 0
    %562 = vmatprep.subr.bf16.mxu0 0
    %563 = vmatpush1.bf16.msra.mxu0 0
    %564 = vmatprep.subr.bf16.mxu0 0
    %565 = vmatpush1.bf16.msra.mxu0 0
    %566 = vmatprep.subr.bf16.mxu0 0
    %567 = vmatpush1.bf16.msra.mxu0 0
    %568 = vmatprep.subr.bf16.mxu0 0
    %569 = vmatpush1.bf16.msra.mxu0 0
    %570 = vmatprep.subr.bf16.mxu0 0
    %571 = vmatpush1.bf16.msra.mxu0 0
    %572 = vmatprep.mubr.bf16.mxu0 0
    %573 = vmatmul.mubr.bf16.gmra.mrb[0].mxu0 %v535
    %v574 = vpop.f32.mrb[0].mxu0
    %v575 = vadd.f32 0.0, %v574
    %v576 = vpop.f32.mrb[0].mxu0
    %v577 = vpop.f32.mrb[0].mxu0
    %v578 = vpop.f32.mrb[0].mxu0
    %579 = vdwg.mxu0
    %580 = vrot.lane.b32.xlu0 %v141, 56
    %v581 = vpop.permute.xlu0 %580
    %v583 = vsel %vm171, %v531, 0
    %v586 = vsel %vm310, %v581, 0
    %588 = vmatprep.subr.bf16.mxu0 0
    %589 = vmatpush1.bf16.msra.mxu0 %v586
    %590 = vmatprep.subr.bf16.mxu0 0
    %591 = vmatpush1.bf16.msra.mxu0 0
    %592 = vmatprep.subr.bf16.mxu0 0
    %593 = vmatpush1.bf16.msra.mxu0 0
    %594 = vmatprep.subr.bf16.mxu0 0
    %595 = vmatpush1.bf16.msra.mxu0 0
    %596 = vmatprep.subr.bf16.mxu0 0
    %597 = vmatpush1.bf16.msra.mxu0 0
    %598 = vmatprep.subr.bf16.mxu0 0
    %599 = vmatpush1.bf16.msra.mxu0 0
    %600 = vmatprep.subr.bf16.mxu0 0
    %601 = vmatpush1.bf16.msra.mxu0 0
    %602 = vmatprep.subr.bf16.mxu0 0
    %603 = vmatpush1.bf16.msra.mxu0 0
    %604 = vmatprep.subr.bf16.mxu0 0
    %605 = vmatpush1.bf16.msra.mxu0 0
    %606 = vmatprep.subr.bf16.mxu0 0
    %607 = vmatpush1.bf16.msra.mxu0 0
    %608 = vmatprep.subr.bf16.mxu0 0
    %609 = vmatpush1.bf16.msra.mxu0 0
    %610 = vmatprep.subr.bf16.mxu0 0
    %611 = vmatpush1.bf16.msra.mxu0 0
    %612 = vmatprep.subr.bf16.mxu0 0
    %613 = vmatpush1.bf16.msra.mxu0 0
    %614 = vmatprep.subr.bf16.mxu0 0
    %615 = vmatpush1.bf16.msra.mxu0 0
    %616 = vmatprep.subr.bf16.mxu0 0
    %617 = vmatpush1.bf16.msra.mxu0 0
    %618 = vmatprep.subr.bf16.mxu0 0
    %619 = vmatpush1.bf16.msra.mxu0 0
    %620 = vmatprep.mubr.bf16.mxu0 0
    %621 = vmatmul.mubr.bf16.gmra.mrb[0].mxu0 %v583
    %v622 = vpop.f32.mrb[0].mxu0
    %v623 = vadd.f32 0.0, %v622
    %v624 = vpop.f32.mrb[0].mxu0
    %v625 = vpop.f32.mrb[0].mxu0
    %v626 = vpop.f32.mrb[0].mxu0
    %627 = vdwg.mxu0
    %v628 = vpack.c.bf16 %v575, %v575
    %v629 = vpack.c.bf16 %v623, %v623
    %630 = vrot.lane.b32.xlu0 %v140, 112
    %v631 = vpop.permute.xlu0 %630
    %632 = vrot.lane.b32.xlu0 %v140, 80
    %v633 = vpop.permute.xlu0 %632
    %v635 = vsel %vm171, %v631, 0
    %v638 = vsel %vm171, %v633, 0
    %640 = vmatprep.subr.bf16.mxu0 0
    %641 = vmatpush1.bf16.xpose.msra.mxu0 %v638
    %642 = vmatprep.subr.bf16.mxu0 0
    %643 = vmatpush1.bf16.xpose.msra.mxu0 0
    %644 = vmatprep.subr.bf16.mxu0 0
    %645 = vmatpush1.bf16.xpose.msra.mxu0 0
    %646 = vmatprep.subr.bf16.mxu0 0
    %647 = vmatpush1.bf16.xpose.msra.mxu0 0
    %648 = vmatprep.subr.bf16.mxu0 0
    %649 = vmatpush1.bf16.xpose.msra.mxu0 0
    %650 = vmatprep.subr.bf16.mxu0 0
    %651 = vmatpush1.bf16.xpose.msra.mxu0 0
    %652 = vmatprep.subr.bf16.mxu0 0
    %653 = vmatpush1.bf16.xpose.msra.mxu0 0
    %654 = vmatprep.subr.bf16.mxu0 0
    %655 = vmatpush1.bf16.xpose.msra.mxu0 0
    %656 = vmatprep.subr.bf16.mxu0 0
    %657 = vmatpush1.bf16.xpose.msra.mxu0 0
    %658 = vmatprep.subr.bf16.mxu0 0
    %659 = vmatpush1.bf16.xpose.msra.mxu0 0
    %660 = vmatprep.subr.bf16.mxu0 0
    %661 = vmatpush1.bf16.xpose.msra.mxu0 0
    %662 = vmatprep.subr.bf16.mxu0 0
    %663 = vmatpush1.bf16.xpose.msra.mxu0 0
    %664 = vmatprep.subr.bf16.mxu0 0
    %665 = vmatpush1.bf16.xpose.msra.mxu0 0
    %666 = vmatprep.subr.bf16.mxu0 0
    %667 = vmatpush1.bf16.xpose.msra.mxu0 0
    %668 = vmatprep.subr.bf16.mxu0 0
    %669 = vmatpush1.bf16.xpose.msra.mxu0 0
    %670 = vmatprep.subr.bf16.mxu0 0
    %671 = vmatpush1.bf16.xpose.msra.mxu0 0
    %672 = vmatprep.mubr.bf16.mxu0 0
    %673 = vmatmul.mubr.bf16.gmra.mrb[0].mxu0 %v635
    %v674 = vpop.f32.mrb[0].mxu0
    %v675 = vadd.f32 0.0, %v674
    %v676 = vpop.f32.mrb[0].mxu0
    %v677 = vpop.f32.mrb[0].mxu0
    %v678 = vpop.f32.mrb[0].mxu0
    %679 = vdwg.mxu0
    %680 = vrot.lane.b32.xlu0 %v141, 112
    %v681 = vpop.permute.xlu0 %680
    %682 = vrot.lane.b32.xlu0 %v141, 80
    %v683 = vpop.permute.xlu0 %682
    %v685 = vsel %vm171, %v681, 0
    %v688 = vsel %vm171, %v683, 0
    %690 = vmatprep.subr.bf16.mxu0 0
    %691 = vmatpush1.bf16.xpose.msra.mxu0 %v688
    %692 = vmatprep.subr.bf16.mxu0 0
    %693 = vmatpush1.bf16.xpose.msra.mxu0 0
    %694 = vmatprep.subr.bf16.mxu0 0
    %695 = vmatpush1.bf16.xpose.msra.mxu0 0
    %696 = vmatprep.subr.bf16.mxu0 0
    %697 = vmatpush1.bf16.xpose.msra.mxu0 0
    %698 = vmatprep.subr.bf16.mxu0 0
    %699 = vmatpush1.bf16.xpose.msra.mxu0 0
    %700 = vmatprep.subr.bf16.mxu0 0
    %701 = vmatpush1.bf16.xpose.msra.mxu0 0
    %702 = vmatprep.subr.bf16.mxu0 0
    %703 = vmatpush1.bf16.xpose.msra.mxu0 0
    %704 = vmatprep.subr.bf16.mxu0 0
    %705 = vmatpush1.bf16.xpose.msra.mxu0 0
    %706 = vmatprep.subr.bf16.mxu0 0
    %707 = vmatpush1.bf16.xpose.msra.mxu0 0
    %708 = vmatprep.subr.bf16.mxu0 0
    %709 = vmatpush1.bf16.xpose.msra.mxu0 0
    %710 = vmatprep.subr.bf16.mxu0 0
    %711 = vmatpush1.bf16.xpose.msra.mxu0 0
    %712 = vmatprep.subr.bf16.mxu0 0
    %713 = vmatpush1.bf16.xpose.msra.mxu0 0
    %714 = vmatprep.subr.bf16.mxu0 0
    %715 = vmatpush1.bf16.xpose.msra.mxu0 0
    %716 = vmatprep.subr.bf16.mxu0 0
    %717 = vmatpush1.bf16.xpose.msra.mxu0 0
    %718 = vmatprep.subr.bf16.mxu0 0
    %719 = vmatpush1.bf16.xpose.msra.mxu0 0
    %720 = vmatprep.subr.bf16.mxu0 0
    %721 = vmatpush1.bf16.xpose.msra.mxu0 0
    %722 = vmatprep.mubr.bf16.mxu0 0
    %723 = vmatmul.mubr.bf16.gmra.mrb[0].mxu0 %v685
    %v724 = vpop.f32.mrb[0].mxu0
    %v725 = vadd.f32 0.0, %v724
    %v726 = vpop.f32.mrb[0].mxu0
    %v727 = vpop.f32.mrb[0].mxu0
    %v728 = vpop.f32.mrb[0].mxu0
    %729 = vdwg.mxu0
    %v730 = vmul.f32 %v675, 0.35355338
    %v731 = vmul.f32 %v725, 0.35355338
    %v732 = vadd.f32 %v730, %v272
    %v733 = vadd.f32 %v731, %v276
    %v734 = vsel %vm171, %v732, -inf
    %735 = vmax.xlane.f32.xlu0 %v734
    %v736 = vpop.xlane.xlu0 %735
    %v737 = vsel %vm171, %v733, -inf
    %738 = vmax.xlane.f32.xlu0 %v737
    %v739 = vpop.xlane.xlu0 %738
    %v740 = vsub.f32 %v732, %v736
    %v741 = vsub.f32 %v733, %v739
    %v742 = vmul.f32 %v740, 1.442695
    %v743 = vpow.pop %v742
    %v744 = vmul.f32 %v741, 1.442695
    %v745 = vpow.pop %v744
    %v746 = vsel %vm171, %v743, 0.0
    %747 = vadd.xlane.f32.xlu0 %v746
    %v748 = vpop.xlane.xlu0 %747
    %v749 = vsel %vm171, %v745, 0.0
    %750 = vadd.xlane.f32.xlu0 %v749
    %v751 = vpop.xlane.xlu0 %750
    %v752 = vrcp.pop %v748
    %v753 = vrcp.pop %v751
    %v754 = vmul.f32 %v743, %v752
    %v755 = vmul.f32 %v745, %v753
    %v756 = vpack.c.bf16 %v754, %v754
    %v757 = vpack.c.bf16 %v755, %v755
    %758 = vrot.lane.b32.xlu0 %v140, 48
    %v759 = vpop.permute.xlu0 %758
    %v761 = vsel %vm171, %v756, 0
    %v764 = vsel %vm310, %v759, 0
    %766 = vmatprep.subr.bf16.mxu0 0
    %767 = vmatpush1.bf16.msra.mxu0 %v764
    %768 = vmatprep.subr.bf16.mxu0 0
    %769 = vmatpush1.bf16.msra.mxu0 0
    %770 = vmatprep.subr.bf16.mxu0 0
    %771 = vmatpush1.bf16.msra.mxu0 0
    %772 = vmatprep.subr.bf16.mxu0 0
    %773 = vmatpush1.bf16.msra.mxu0 0
    %774 = vmatprep.subr.bf16.mxu0 0
    %775 = vmatpush1.bf16.msra.mxu0 0
    %776 = vmatprep.subr.bf16.mxu0 0
    %777 = vmatpush1.bf16.msra.mxu0 0
    %778 = vmatprep.subr.bf16.mxu0 0
    %779 = vmatpush1.bf16.msra.mxu0 0
    %780 = vmatprep.subr.bf16.mxu0 0
    %781 = vmatpush1.bf16.msra.mxu0 0
    %782 = vmatprep.subr.bf16.mxu0 0
    %783 = vmatpush1.bf16.msra.mxu0 0
    %784 = vmatprep.subr.bf16.mxu0 0
    %785 = vmatpush1.bf16.msra.mxu0 0
    %786 = vmatprep.subr.bf16.mxu0 0
    %787 = vmatpush1.bf16.msra.mxu0 0
    %788 = vmatprep.subr.bf16.mxu0 0
    %789 = vmatpush1.bf16.msra.mxu0 0
    %790 = vmatprep.subr.bf16.mxu0 0
    %791 = vmatpush1.bf16.msra.mxu0 0
    %792 = vmatprep.subr.bf16.mxu0 0
    %793 = vmatpush1.bf16.msra.mxu0 0
    %794 = vmatprep.subr.bf16.mxu0 0
    %795 = vmatpush1.bf16.msra.mxu0 0
    %796 = vmatprep.subr.bf16.mxu0 0
    %797 = vmatpush1.bf16.msra.mxu0 0
    %798 = vmatprep.mubr.bf16.mxu0 0
    %799 = vmatmul.mubr.bf16.gmra.mrb[0].mxu0 %v761
    %v800 = vpop.f32.mrb[0].mxu0
    %v801 = vadd.f32 0.0, %v800
    %v802 = vpop.f32.mrb[0].mxu0
    %v803 = vpop.f32.mrb[0].mxu0
    %v804 = vpop.f32.mrb[0].mxu0
    %805 = vdwg.mxu0
    %806 = vrot.lane.b32.xlu0 %v141, 48
    %v807 = vpop.permute.xlu0 %806
    %v809 = vsel %vm171, %v757, 0
    %v812 = vsel %vm310, %v807, 0
    %814 = vmatprep.subr.bf16.mxu0 0
    %815 = vmatpush1.bf16.msra.mxu0 %v812
    %816 = vmatprep.subr.bf16.mxu0 0
    %817 = vmatpush1.bf16.msra.mxu0 0
    %818 = vmatprep.subr.bf16.mxu0 0
    %819 = vmatpush1.bf16.msra.mxu0 0
    %820 = vmatprep.subr.bf16.mxu0 0
    %821 = vmatpush1.bf16.msra.mxu0 0
    %822 = vmatprep.subr.bf16.mxu0 0
    %823 = vmatpush1.bf16.msra.mxu0 0
    %824 = vmatprep.subr.bf16.mxu0 0
    %825 = vmatpush1.bf16.msra.mxu0 0
    %826 = vmatprep.subr.bf16.mxu0 0
    %827 = vmatpush1.bf16.msra.mxu0 0
    %828 = vmatprep.subr.bf16.mxu0 0
    %829 = vmatpush1.bf16.msra.mxu0 0
    %830 = vmatprep.subr.bf16.mxu0 0
    %831 = vmatpush1.bf16.msra.mxu0 0
    %832 = vmatprep.subr.bf16.mxu0 0
    %833 = vmatpush1.bf16.msra.mxu0 0
    %834 = vmatprep.subr.bf16.mxu0 0
    %835 = vmatpush1.bf16.msra.mxu0 0
    %836 = vmatprep.subr.bf16.mxu0 0
    %837 = vmatpush1.bf16.msra.mxu0 0
    %838 = vmatprep.subr.bf16.mxu0 0
    %839 = vmatpush1.bf16.msra.mxu0 0
    %840 = vmatprep.subr.bf16.mxu0 0
    %841 = vmatpush1.bf16.msra.mxu0 0
    %842 = vmatprep.subr.bf16.mxu0 0
    %843 = vmatpush1.bf16.msra.mxu0 0
    %844 = vmatprep.subr.bf16.mxu0 0
    %845 = vmatpush1.bf16.msra.mxu0 0
    %846 = vmatprep.mubr.bf16.mxu0 0
    %847 = vmatmul.mubr.bf16.gmra.mrb[0].mxu0 %v809
    %v848 = vpop.f32.mrb[0].mxu0
    %v849 = vadd.f32 0.0, %v848
    %v850 = vpop.f32.mrb[0].mxu0
    %v851 = vpop.f32.mrb[0].mxu0
    %v852 = vpop.f32.mrb[0].mxu0
    %853 = vdwg.mxu0
    %v854 = vpack.c.bf16 %v801, %v801
    %v855 = vpack.c.bf16 %v849, %v849
    %856 = vrot.lane.b32.xlu0 %v140, 104
    %v857 = vpop.permute.xlu0 %856
    %858 = vrot.lane.b32.xlu0 %v140, 72
    %v859 = vpop.permute.xlu0 %858
    %v861 = vsel %vm171, %v857, 0
    %v864 = vsel %vm171, %v859, 0
    %866 = vmatprep.subr.bf16.mxu0 0
    %867 = vmatpush1.bf16.xpose.msra.mxu0 %v864
    %868 = vmatprep.subr.bf16.mxu0 0
    %869 = vmatpush1.bf16.xpose.msra.mxu0 0
    %870 = vmatprep.subr.bf16.mxu0 0
    %871 = vmatpush1.bf16.xpose.msra.mxu0 0
    %872 = vmatprep.subr.bf16.mxu0 0
    %873 = vmatpush1.bf16.xpose.msra.mxu0 0
    %874 = vmatprep.subr.bf16.mxu0 0
    %875 = vmatpush1.bf16.xpose.msra.mxu0 0
    %876 = vmatprep.subr.bf16.mxu0 0
    %877 = vmatpush1.bf16.xpose.msra.mxu0 0
    %878 = vmatprep.subr.bf16.mxu0 0
    %879 = vmatpush1.bf16.xpose.msra.mxu0 0
    %880 = vmatprep.subr.bf16.mxu0 0
    %881 = vmatpush1.bf16.xpose.msra.mxu0 0
    %882 = vmatprep.subr.bf16.mxu0 0
    %883 = vmatpush1.bf16.xpose.msra.mxu0 0
    %884 = vmatprep.subr.bf16.mxu0 0
    %885 = vmatpush1.bf16.xpose.msra.mxu0 0
    %886 = vmatprep.subr.bf16.mxu0 0
    %887 = vmatpush1.bf16.xpose.msra.mxu0 0
    %888 = vmatprep.subr.bf16.mxu0 0
    %889 = vmatpush1.bf16.xpose.msra.mxu0 0
    %890 = vmatprep.subr.bf16.mxu0 0
    %891 = vmatpush1.bf16.xpose.msra.mxu0 0
    %892 = vmatprep.subr.bf16.mxu0 0
    %893 = vmatpush1.bf16.xpose.msra.mxu0 0
    %894 = vmatprep.subr.bf16.mxu0 0
    %895 = vmatpush1.bf16.xpose.msra.mxu0 0
    %896 = vmatprep.subr.bf16.mxu0 0
    %897 = vmatpush1.bf16.xpose.msra.mxu0 0
    %898 = vmatprep.mubr.bf16.mxu0 0
    %899 = vmatmul.mubr.bf16.gmra.mrb[0].mxu0 %v861
    %v900 = vpop.f32.mrb[0].mxu0
    %v901 = vadd.f32 0.0, %v900
    %v902 = vpop.f32.mrb[0].mxu0
    %v903 = vpop.f32.mrb[0].mxu0
    %v904 = vpop.f32.mrb[0].mxu0
    %905 = vdwg.mxu0
    %906 = vrot.lane.b32.xlu0 %v141, 104
    %v907 = vpop.permute.xlu0 %906
    %908 = vrot.lane.b32.xlu0 %v141, 72
    %v909 = vpop.permute.xlu0 %908
    %v911 = vsel %vm171, %v907, 0
    %v914 = vsel %vm171, %v909, 0
    %916 = vmatprep.subr.bf16.mxu0 0
    %917 = vmatpush1.bf16.xpose.msra.mxu0 %v914
    %918 = vmatprep.subr.bf16.mxu0 0
    %919 = vmatpush1.bf16.xpose.msra.mxu0 0
    %920 = vmatprep.subr.bf16.mxu0 0
    %921 = vmatpush1.bf16.xpose.msra.mxu0 0
    %922 = vmatprep.subr.bf16.mxu0 0
    %923 = vmatpush1.bf16.xpose.msra.mxu0 0
    %924 = vmatprep.subr.bf16.mxu0 0
    %925 = vmatpush1.bf16.xpose.msra.mxu0 0
    %926 = vmatprep.subr.bf16.mxu0 0
    %927 = vmatpush1.bf16.xpose.msra.mxu0 0
    %928 = vmatprep.subr.bf16.mxu0 0
    %929 = vmatpush1.bf16.xpose.msra.mxu0 0
    %930 = vmatprep.subr.bf16.mxu0 0
    %931 = vmatpush1.bf16.xpose.msra.mxu0 0
    %932 = vmatprep.subr.bf16.mxu0 0
    %933 = vmatpush1.bf16.xpose.msra.mxu0 0
    %934 = vmatprep.subr.bf16.mxu0 0
    %935 = vmatpush1.bf16.xpose.msra.mxu0 0
    %936 = vmatprep.subr.bf16.mxu0 0
    %937 = vmatpush1.bf16.xpose.msra.mxu0 0
    %938 = vmatprep.subr.bf16.mxu0 0
    %939 = vmatpush1.bf16.xpose.msra.mxu0 0
    %940 = vmatprep.subr.bf16.mxu0 0
    %941 = vmatpush1.bf16.xpose.msra.mxu0 0
    %942 = vmatprep.subr.bf16.mxu0 0
    %943 = vmatpush1.bf16.xpose.msra.mxu0 0
    %944 = vmatprep.subr.bf16.mxu0 0
    %945 = vmatpush1.bf16.xpose.msra.mxu0 0
    %946 = vmatprep.subr.bf16.mxu0 0
    %947 = vmatpush1.bf16.xpose.msra.mxu0 0
    %948 = vmatprep.mubr.bf16.mxu0 0
    %949 = vmatmul.mubr.bf16.gmra.mrb[0].mxu0 %v911
    %v950 = vpop.f32.mrb[0].mxu0
    %v951 = vadd.f32 0.0, %v950
    %v952 = vpop.f32.mrb[0].mxu0
    %v953 = vpop.f32.mrb[0].mxu0
    %v954 = vpop.f32.mrb[0].mxu0
    %955 = vdwg.mxu0
    %v956 = vmul.f32 %v901, 0.35355338
    %v957 = vmul.f32 %v951, 0.35355338
    %v958 = vadd.f32 %v956, %v272
    %v959 = vadd.f32 %v957, %v276
    %v960 = vsel %vm171, %v958, -inf
    %961 = vmax.xlane.f32.xlu0 %v960
    %v962 = vpop.xlane.xlu0 %961
    %v963 = vsel %vm171, %v959, -inf
    %964 = vmax.xlane.f32.xlu0 %v963
    %v965 = vpop.xlane.xlu0 %964
    %v966 = vsub.f32 %v958, %v962
    %v967 = vsub.f32 %v959, %v965
    %v968 = vmul.f32 %v966, 1.442695
    %v969 = vpow.pop %v968
    %v970 = vmul.f32 %v967, 1.442695
    %v971 = vpow.pop %v970
    %v972 = vsel %vm171, %v969, 0.0
    %973 = vadd.xlane.f32.xlu0 %v972
    %v974 = vpop.xlane.xlu0 %973
    %v975 = vsel %vm171, %v971, 0.0
    %976 = vadd.xlane.f32.xlu0 %v975
    %v977 = vpop.xlane.xlu0 %976
    %v978 = vrcp.pop %v974
    %v979 = vrcp.pop %v977
    %v980 = vmul.f32 %v969, %v978
    %v981 = vmul.f32 %v971, %v979
    %v982 = vpack.c.bf16 %v980, %v980
    %v983 = vpack.c.bf16 %v981, %v981
    %984 = vrot.lane.b32.xlu0 %v140, 40
    %v985 = vpop.permute.xlu0 %984
    %v987 = vsel %vm171, %v982, 0
    %v990 = vsel %vm310, %v985, 0
    %992 = vmatprep.subr.bf16.mxu0 0
    %993 = vmatpush1.bf16.msra.mxu0 %v990
    %994 = vmatprep.subr.bf16.mxu0 0
    %995 = vmatpush1.bf16.msra.mxu0 0
    %996 = vmatprep.subr.bf16.mxu0 0
    %997 = vmatpush1.bf16.msra.mxu0 0
    %998 = vmatprep.subr.bf16.mxu0 0
    %999 = vmatpush1.bf16.msra.mxu0 0
    %1000 = vmatprep.subr.bf16.mxu0 0
    %1001 = vmatpush1.bf16.msra.mxu0 0
    %1002 = vmatprep.subr.bf16.mxu0 0
    %1003 = vmatpush1.bf16.msra.mxu0 0
    %1004 = vmatprep.subr.bf16.mxu0 0
    %1005 = vmatpush1.bf16.msra.mxu0 0
    %1006 = vmatprep.subr.bf16.mxu0 0
    %1007 = vmatpush1.bf16.msra.mxu0 0
    %1008 = vmatprep.subr.bf16.mxu0 0
    %1009 = vmatpush1.bf16.msra.mxu0 0
    %1010 = vmatprep.subr.bf16.mxu0 0
    %1011 = vmatpush1.bf16.msra.mxu0 0
    %1012 = vmatprep.subr.bf16.mxu0 0
    %1013 = vmatpush1.bf16.msra.mxu0 0
    %1014 = vmatprep.subr.bf16.mxu0 0
    %1015 = vmatpush1.bf16.msra.mxu0 0
    %1016 = vmatprep.subr.bf16.mxu0 0
    %1017 = vmatpush1.bf16.msra.mxu0 0
    %1018 = vmatprep.subr.bf16.mxu0 0
    %1019 = vmatpush1.bf16.msra.mxu0 0
    %1020 = vmatprep.subr.bf16.mxu0 0
    %1021 = vmatpush1.bf16.msra.mxu0 0
    %1022 = vmatprep.subr.bf16.mxu0 0
    %1023 = vmatpush1.bf16.msra.mxu0 0
    %1024 = vmatprep.mubr.bf16.mxu0 0
    %1025 = vmatmul.mubr.bf16.gmra.mrb[0].mxu0 %v987
    %v1026 = vpop.f32.mrb[0].mxu0
    %v1027 = vadd.f32 0.0, %v1026
    %v1028 = vpop.f32.mrb[0].mxu0
    %v1029 = vpop.f32.mrb[0].mxu0
    %v1030 = vpop.f32.mrb[0].mxu0
    %1031 = vdwg.mxu0
    %1032 = vrot.lane.b32.xlu0 %v141, 40
    %v1033 = vpop.permute.xlu0 %1032
    %v1035 = vsel %vm171, %v983, 0
    %v1038 = vsel %vm310, %v1033, 0
    %1040 = vmatprep.subr.bf16.mxu0 0
    %1041 = vmatpush1.bf16.msra.mxu0 %v1038
    %1042 = vmatprep.subr.bf16.mxu0 0
    %1043 = vmatpush1.bf16.msra.mxu0 0
    %1044 = vmatprep.subr.bf16.mxu0 0
    %1045 = vmatpush1.bf16.msra.mxu0 0
    %1046 = vmatprep.subr.bf16.mxu0 0
    %1047 = vmatpush1.bf16.msra.mxu0 0
    %1048 = vmatprep.subr.bf16.mxu0 0
    %1049 = vmatpush1.bf16.msra.mxu0 0
    %1050 = vmatprep.subr.bf16.mxu0 0
    %1051 = vmatpush1.bf16.msra.mxu0 0
    %1052 = vmatprep.subr.bf16.mxu0 0
    %1053 = vmatpush1.bf16.msra.mxu0 0
    %1054 = vmatprep.subr.bf16.mxu0 0
    %1055 = vmatpush1.bf16.msra.mxu0 0
    %1056 = vmatprep.subr.bf16.mxu0 0
    %1057 = vmatpush1.bf16.msra.mxu0 0
    %1058 = vmatprep.subr.bf16.mxu0 0
    %1059 = vmatpush1.bf16.msra.mxu0 0
    %1060 = vmatprep.subr.bf16.mxu0 0
    %1061 = vmatpush1.bf16.msra.mxu0 0
    %1062 = vmatprep.subr.bf16.mxu0 0
    %1063 = vmatpush1.bf16.msra.mxu0 0
    %1064 = vmatprep.subr.bf16.mxu0 0
    %1065 = vmatpush1.bf16.msra.mxu0 0
    %1066 = vmatprep.subr.bf16.mxu0 0
    %1067 = vmatpush1.bf16.msra.mxu0 0
    %1068 = vmatprep.subr.bf16.mxu0 0
    %1069 = vmatpush1.bf16.msra.mxu0 0
    %1070 = vmatprep.subr.bf16.mxu0 0
    %1071 = vmatpush1.bf16.msra.mxu0 0
    %1072 = vmatprep.mubr.bf16.mxu0 0
    %1073 = vmatmul.mubr.bf16.gmra.mrb[0].mxu0 %v1035
    %v1074 = vpop.f32.mrb[0].mxu0
    %v1075 = vadd.f32 0.0, %v1074
    %v1076 = vpop.f32.mrb[0].mxu0
    %v1077 = vpop.f32.mrb[0].mxu0
    %v1078 = vpop.f32.mrb[0].mxu0
    %1079 = vdwg.mxu0
    %v1080 = vpack.c.bf16 %v1027, %v1027
    %v1081 = vpack.c.bf16 %v1075, %v1075
    %1084 = vrot.lane.b32.xlu0 %v628, 8
    %v1085 = vpop.permute.xlu0 %1084
    %1086 = vrot.lane.b32.xlu0 %v629, 8
    %v1087 = vpop.permute.xlu0 %1086
    %1090 = vrot.lane.b32.xlu0 %v854, 16
    %v1091 = vpop.permute.xlu0 %1090
    %1092 = vrot.lane.b32.xlu0 %v855, 16
    %v1093 = vpop.permute.xlu0 %1092
    %1096 = vrot.lane.b32.xlu0 %v1080, 24
    %v1097 = vpop.permute.xlu0 %1096
    %1098 = vrot.lane.b32.xlu0 %v1081, 24
    %v1099 = vpop.permute.xlu0 %1098
    %v1102 = vsel %vm171, %v402, %v1085
    %v1105 = vsel %vm171, %v403, %v1087
    %vm1106 = vcmask 130048
    %v1108 = vsel %vm1106, %v1102, %v1091
    %v1110 = vsel %vm1106, %v1105, %v1093
    %vm1111 = vcmask 195584
    %v1113 = vsel %vm1111, %v1108, %v1097
    %v1115 = vsel %vm1111, %v1110, %v1099
    %v1116 = vld [vmem:[%s4] sm:$0xf]
    %v1117 = vld [vmem:[%s4 + $0x4] sm:$0xf]
    %v1118 = vld [vmem:[%s4 + $0x8] sm:$0xf]
    %v1119 = vld [vmem:[%s4 + $0xc] sm:$0xf]
    %v1120 = vld [vmem:[%s5] sm:$0x1]
    %v1122 = vlaneseq
    %v1123 = vshrl.u32 %v1122, 7
    %v1124 = vsub.s32 0, %v1123
    %v1125 = vrot.slane %v1120, %v1124
    %v1129 = vunpack.c.l.b16 %v1113
    %v1130 = vunpack.c.l.b16 %v1115
    %v1131 = vpack.c.b16 %v1130, %v1129
    %v1136 = vunpack.c.l.b16 %v1116
    %v1137 = vunpack.c.l.b16 %v1117
    %v1138 = vunpack.c.l.b16 %v1118
    %v1139 = vunpack.c.l.b16 %v1119
    %v1140 = vpack.c.b16 %v1137, %v1136
    %v1141 = vpack.c.b16 %v1139, %v1138
    %v1145 = vsel %vm95, %v1131, 0
    %1147 = vmatprep.subr.bf16.mxu0 0
    %1148 = vmatpush1.bf16.msra.mxu0 %v1140
    %1149 = vmatprep.subr.bf16.mxu0 0
    %1150 = vmatpush1.bf16.msra.mxu0 %v1141
    %1151 = vmatprep.subr.bf16.mxu0 0
    %1152 = vmatpush1.bf16.msra.mxu0 0
    %1153 = vmatprep.subr.bf16.mxu0 0
    %1154 = vmatpush1.bf16.msra.mxu0 0
    %1155 = vmatprep.subr.bf16.mxu0 0
    %1156 = vmatpush1.bf16.msra.mxu0 0
    %1157 = vmatprep.subr.bf16.mxu0 0
    %1158 = vmatpush1.bf16.msra.mxu0 0
    %1159 = vmatprep.subr.bf16.mxu0 0
    %1160 = vmatpush1.bf16.msra.mxu0 0
    %1161 = vmatprep.subr.bf16.mxu0 0
    %1162 = vmatpush1.bf16.msra.mxu0 0
    %1163 = vmatprep.subr.bf16.mxu0 0
    %1164 = vmatpush1.bf16.msra.mxu0 0
    %1165 = vmatprep.subr.bf16.mxu0 0
    %1166 = vmatpush1.bf16.msra.mxu0 0
    %1167 = vmatprep.subr.bf16.mxu0 0
    %1168 = vmatpush1.bf16.msra.mxu0 0
    %1169 = vmatprep.subr.bf16.mxu0 0
    %1170 = vmatpush1.bf16.msra.mxu0 0
    %1171 = vmatprep.subr.bf16.mxu0 0
    %1172 = vmatpush1.bf16.msra.mxu0 0
    %1173 = vmatprep.subr.bf16.mxu0 0
    %1174 = vmatpush1.bf16.msra.mxu0 0
    %1175 = vmatprep.subr.bf16.mxu0 0
    %1176 = vmatpush1.bf16.msra.mxu0 0
    %1177 = vmatprep.subr.bf16.mxu0 0
    %1178 = vmatpush1.bf16.msra.mxu0 0
    %1179 = vmatprep.mubr.bf16.mxu0 0
    %1180 = vmatmul.mubr.bf16.gmra.mrb[0].mxu0 %v1145
    %v1181 = vpop.f32.mrb[0].mxu0
    %v1182 = vadd.f32 %v1125, %v1181
    %v1183 = vpop.f32.mrb[0].mxu0
    %v1184 = vpop.f32.mrb[0].mxu0
    %v1185 = vadd.f32 %v1125, %v1184
    %v1186 = vpop.f32.mrb[0].mxu0
    %1187 = vdwg.mxu0
    %v1188 = vadd.f32 %v65, %v1182
    %v1189 = vadd.f32 %v66, %v1185
    %v1190 = vld [vmem:[%s6] sm:$0x1]
    %v1191 = vld [vmem:[%s7] sm:$0x1]
    %v1192 = vsel %vm95, %v1188, 0.0
    %1193 = vadd.xlane.f32.xlu0 %v1192
    %v1194 = vpop.xlane.xlu0 %1193
    %v1195 = vsel %vm95, %v1189, 0.0
    %1196 = vadd.xlane.f32.xlu0 %v1195
    %v1197 = vpop.xlane.xlu0 %1196
    %v1198 = vrcp.pop 32.0
    %v1199 = vmul.f32 %v1194, %v1198
    %v1200 = vmul.f32 %v1197, %v1198
    %v1201 = vsub.f32 %v1188, %v1199
    %v1202 = vsub.f32 %v1189, %v1200
    %v1203 = vmul.f32 %v1201, %v1201
    %v1204 = vmul.f32 %v1202, %v1202
    %v1205 = vsel %vm95, %v1203, 0.0
    %1206 = vadd.xlane.f32.xlu0 %v1205
    %v1207 = vpop.xlane.xlu0 %1206
    %v1208 = vsel %vm95, %v1204, 0.0
    %1209 = vadd.xlane.f32.xlu0 %v1208
    %v1210 = vpop.xlane.xlu0 %1209
    %v1211 = vmul.f32 %v1207, %v1198
    %v1212 = vmul.f32 %v1210, %v1198
    %v1213 = vadd.f32 %v1211, 1e-05
    %v1214 = vadd.f32 %v1212, 1e-05
    %v1215 = vrsqrt.pop %v1213
    %v1216 = vrsqrt.pop %v1214
    %v1217 = vmul.f32 %v1201, %v1215
    %v1218 = vmul.f32 %v1202, %v1216
    %v1220 = vlaneseq
    %v1221 = vshrl.u32 %v1220, 7
    %v1222 = vsub.s32 0, %v1221
    %v1223 = vrot.slane %v1190, %v1222
    %v1225 = vmul.f32 %v1217, %v1223
    %v1226 = vmul.f32 %v1218, %v1223
    %v1228 = vlaneseq
    %v1229 = vshrl.u32 %v1228, 7
    %v1230 = vsub.s32 0, %v1229
    %v1231 = vrot.slane %v1191, %v1230
    %v1233 = vadd.f32 %v1225, %v1231
    %v1234 = vadd.f32 %v1226, %v1231
    %v1235 = vpack.c.bf16 %v1234, %v1233
    %v1236 = vld [vmem:[%s8] sm:$0xf]
    %v1237 = vld [vmem:[%s8 + $0x4] sm:$0xf]
    %v1238 = vld [vmem:[%s8 + $0x8] sm:$0xf]
    %v1239 = vld [vmem:[%s8 + $0xc] sm:$0xf]
    %v1240 = vld [vmem:[%s9] sm:$0x1]
    %v1242 = vlaneseq
    %v1243 = vshrl.u32 %v1242, 7
    %v1244 = vsub.s32 0, %v1243
    %v1245 = vrot.slane %v1240, %v1244
    %v1251 = vunpack.c.l.b16 %v1236
    %v1252 = vunpack.c.l.b16 %v1237
    %v1253 = vunpack.c.l.b16 %v1238
    %v1254 = vunpack.c.l.b16 %v1239
    %v1255 = vpack.c.b16 %v1252, %v1251
    %v1256 = vpack.c.b16 %v1254, %v1253
    %v1260 = vsel %vm95, %v1235, 0
    %1262 = vmatprep.subr.bf16.mxu0 0
    %1263 = vmatpush1.bf16.msra.mxu0 %v1255
    %1264 = vmatprep.subr.bf16.mxu0 0
    %1265 = vmatpush1.bf16.msra.mxu0 %v1256
    %1266 = vmatprep.subr.bf16.mxu0 0
    %1267 = vmatpush1.bf16.msra.mxu0 0
    %1268 = vmatprep.subr.bf16.mxu0 0
    %1269 = vmatpush1.bf16.msra.mxu0 0
    %1270 = vmatprep.subr.bf16.mxu0 0
    %1271 = vmatpush1.bf16.msra.mxu0 0
    %1272 = vmatprep.subr.bf16.mxu0 0
    %1273 = vmatpush1.bf16.msra.mxu0 0
    %1274 = vmatprep.subr.bf16.mxu0 0
    %1275 = vmatpush1.bf16.msra.mxu0 0
    %1276 = vmatprep.subr.bf16.mxu0 0
    %1277 = vmatpush1.bf16.msra.mxu0 0
    %1278 = vmatprep.subr.bf16.mxu0 0
    %1279 = vmatpush1.bf16.msra.mxu0 0
    %1280 = vmatprep.subr.bf16.mxu0 0
    %1281 = vmatpush1.bf16.msra.mxu0 0
    %1282 = vmatprep.subr.bf16.mxu0 0
    %1283 = vmatpush1.bf16.msra.mxu0 0
    %1284 = vmatprep.subr.bf16.mxu0 0
    %1285 = vmatpush1.bf16.msra.mxu0 0
    %1286 = vmatprep.subr.bf16.mxu0 0
    %1287 = vmatpush1.bf16.msra.mxu0 0
    %1288 = vmatprep.subr.bf16.mxu0 0
    %1289 = vmatpush1.bf16.msra.mxu0 0
    %1290 = vmatprep.subr.bf16.mxu0 0
    %1291 = vmatpush1.bf16.msra.mxu0 0
    %1292 = vmatprep.subr.bf16.mxu0 0
    %1293 = vmatpush1.bf16.msra.mxu0 0
    %1294 = vmatprep.mubr.bf16.mxu0 0
    %1295 = vmatmul.mubr.bf16.gmra.mrb[0].mxu0 %v1260
    %v1296 = vpop.f32.mrb[0].mxu0
    %v1297 = vadd.f32 %v1245, %v1296
    %v1298 = vpop.f32.mrb[0].mxu0
    %v1299 = vpop.f32.mrb[0].mxu0
    %v1300 = vadd.f32 %v1245, %v1299
    %v1301 = vpop.f32.mrb[0].mxu0
    %1302 = vdwg.mxu0
    %v1303 = vmax.f32 %v1297, 0.0
    %v1304 = vmax.f32 %v1300, 0.0
    %v1305 = vpack.c.bf16 %v1304, %v1303
    %v1306 = vld [vmem:[%s10] sm:$0xf]
    %v1307 = vld [vmem:[%s10 + $0x4] sm:$0xf]
    %v1308 = vld [vmem:[%s10 + $0x8] sm:$0xf]
    %v1309 = vld [vmem:[%s10 + $0xc] sm:$0xf]
    %v1310 = vld [vmem:[%s10 + $0x10] sm:$0xf]
    %v1311 = vld [vmem:[%s10 + $0x14] sm:$0xf]
    %v1312 = vld [vmem:[%s10 + $0x18] sm:$0xf]
    %v1313 = vld [vmem:[%s10 + $0x1c] sm:$0xf]
    %v1314 = vld [vmem:[%s11] sm:$0x1]
    %v1316 = vlaneseq
    %v1317 = vshrl.u32 %v1316, 7
    %v1318 = vsub.s32 0, %v1317
    %v1319 = vrot.slane %v1314, %v1318
    %v1329 = vunpack.c.l.b16 %v1306
    %v1330 = vunpack.c.l.b16 %v1307
    %v1331 = vunpack.c.l.b16 %v1308
    %v1332 = vunpack.c.l.b16 %v1309
    %v1333 = vunpack.c.l.b16 %v1310
    %v1334 = vunpack.c.l.b16 %v1311
    %v1335 = vunpack.c.l.b16 %v1312
    %v1336 = vunpack.c.l.b16 %v1313
    %v1337 = vpack.c.b16 %v1330, %v1329
    %v1338 = vpack.c.b16 %v1332, %v1331
    %v1339 = vpack.c.b16 %v1334, %v1333
    %v1340 = vpack.c.b16 %v1336, %v1335
    %vm1345 = vcmask 523264
    %v1347 = vsel %vm1345, %v1305, 0
    %1349 = vmatprep.subr.bf16.mxu0 0
    %1350 = vmatpush1.bf16.msra.mxu0 %v1337
    %1351 = vmatprep.subr.bf16.mxu0 0
    %1352 = vmatpush1.bf16.msra.mxu0 %v1338
    %1353 = vmatprep.subr.bf16.mxu0 0
    %1354 = vmatpush1.bf16.msra.mxu0 %v1339
    %1355 = vmatprep.subr.bf16.mxu0 0
    %1356 = vmatpush1.bf16.msra.mxu0 %v1340
    %1357 = vmatprep.subr.bf16.mxu0 0
    %1358 = vmatpush1.bf16.msra.mxu0 0
    %1359 = vmatprep.subr.bf16.mxu0 0
    %1360 = vmatpush1.bf16.msra.mxu0 0
    %1361 = vmatprep.subr.bf16.mxu0 0
    %1362 = vmatpush1.bf16.msra.mxu0 0
    %1363 = vmatprep.subr.bf16.mxu0 0
    %1364 = vmatpush1.bf16.msra.mxu0 0
    %1365 = vmatprep.subr.bf16.mxu0 0
    %1366 = vmatpush1.bf16.msra.mxu0 0
    %1367 = vmatprep.subr.bf16.mxu0 0
    %1368 = vmatpush1.bf16.msra.mxu0 0
    %1369 = vmatprep.subr.bf16.mxu0 0
    %1370 = vmatpush1.bf16.msra.mxu0 0
    %1371 = vmatprep.subr.bf16.mxu0 0
    %1372 = vmatpush1.bf16.msra.mxu0 0
    %1373 = vmatprep.subr.bf16.mxu0 0
    %1374 = vmatpush1.bf16.msra.mxu0 0
    %1375 = vmatprep.subr.bf16.mxu0 0
    %1376 = vmatpush1.bf16.msra.mxu0 0
    %1377 = vmatprep.subr.bf16.mxu0 0
    %1378 = vmatpush1.bf16.msra.mxu0 0
    %1379 = vmatprep.subr.bf16.mxu0 0
    %1380 = vmatpush1.bf16.msra.mxu0 0
    %1381 = vmatprep.mubr.bf16.mxu0 0
    %1382 = vmatmul.mubr.bf16.gmra.mrb[0].mxu0 %v1347
    %v1383 = vpop.f32.mrb[0].mxu0
    %v1384 = vadd.f32 %v1319, %v1383
    %v1385 = vpop.f32.mrb[0].mxu0
    %v1386 = vpop.f32.mrb[0].mxu0
    %v1387 = vadd.f32 %v1319, %v1386
    %v1388 = vpop.f32.mrb[0].mxu0
    %1389 = vdwg.mxu0
    %v1390 = vadd.f32 %v1233, %v1384
    %v1391 = vadd.f32 %v1234, %v1387
    %v1392 = vld [vmem:[%s12] sm:$0x1]
    %v1393 = vld [vmem:[%s13] sm:$0x1]
    %v1394 = vsel %vm95, %v1390, 0.0
    %1395 = vadd.xlane.f32.xlu0 %v1394
    %v1396 = vpop.xlane.xlu0 %1395
    %v1397 = vsel %vm95, %v1391, 0.0
    %1398 = vadd.xlane.f32.xlu0 %v1397
    %v1399 = vpop.xlane.xlu0 %1398
    %v1400 = vmul.f32 %v1396, %v1198
    %v1401 = vmul.f32 %v1399, %v1198
    %v1402 = vsub.f32 %v1390, %v1400
    %v1403 = vsub.f32 %v1391, %v1401
    %v1404 = vmul.f32 %v1402, %v1402
    %v1405 = vmul.f32 %v1403, %v1403
    %v1406 = vsel %vm95, %v1404, 0.0
    %1407 = vadd.xlane.f32.xlu0 %v1406
    %v1408 = vpop.xlane.xlu0 %1407
    %v1409 = vsel %vm95, %v1405, 0.0
    %1410 = vadd.xlane.f32.xlu0 %v1409
    %v1411 = vpop.xlane.xlu0 %1410
    %v1412 = vmul.f32 %v1408, %v1198
    %v1413 = vmul.f32 %v1411, %v1198
    %v1414 = vadd.f32 %v1412, 1e-05
    %v1415 = vadd.f32 %v1413, 1e-05
    %v1416 = vrsqrt.pop %v1414
    %v1417 = vrsqrt.pop %v1415
    %v1418 = vmul.f32 %v1402, %v1416
    %v1419 = vmul.f32 %v1403, %v1417
    %v1421 = vlaneseq
    %v1422 = vshrl.u32 %v1421, 7
    %v1423 = vsub.s32 0, %v1422
    %v1424 = vrot.slane %v1392, %v1423
    %v1426 = vmul.f32 %v1418, %v1424
    %v1427 = vmul.f32 %v1419, %v1424
    %v1429 = vlaneseq
    %v1430 = vshrl.u32 %v1429, 7
    %v1431 = vsub.s32 0, %v1430
    %v1432 = vrot.slane %v1393, %v1431
    %v1434 = vadd.f32 %v1426, %v1432
    %v1435 = vadd.f32 %v1427, %v1432
    %v1436 = vpack.c.bf16 %v1434, %v1434
    %v1437 = vpack.c.bf16 %v1435, %v1435
    %vm1438 = vcmask 257024
    %1439 = vst.msk [vmem:[#allocation5] sm:$0xf] %vm1438, %v1436
    %1440 = vst.msk [vmem:[#allocation5 + $0x4] sm:$0xf] %vm1438, %v1437
    // Predicated region
    $region62: #{tpu_custom_call.1} parent=1 // pred_check
      _
    $region63: #{tpu_custom_call.1} parent=1 // pred_check_branch
      %1442 = sbr.rel (0) target = $region65
    $region64: #{tpu_custom_call.1} parent=1 // pred_region
      %s1444 = ssub.s32 128, 128
      %1445 = vsyncadd [#allocation4], %s1444
      %s1446 = sshll.u32 [#allocation5], 4
      %s1447 = int_to_ptr.vmem [resolvable:$true] %s1446
      %1452 = dma.vmem_to_hbm [thread:$0]  %s1447, 128, %s14, [#allocation4], 64, 64, 4
    $region65: #{tpu_custom_call.1} parent=1 // pred_fallthru
      _
    // Predicated region
    $region66: #{tpu_custom_call.1} parent=1 // pred_check
      _
    $region67: #{tpu_custom_call.1} parent=1 // pred_check_branch
      %1454 = sbr.rel (0) target = $region69
    $region68: #{tpu_custom_call.1} parent=1 // pred_region
      %1455 = dma.done [#allocation4], 128
    $region69: #{tpu_custom_call.1} parent=1 // pred_fallthru
      _
    %1456 = vsyncpa [#allocation3], 1
    %1457 = vsyncpa [#allocation4], 1

</llo_original>
